<compile_context>
chip_gen: v7x
topology: tpu7x:2x2x1
jax: 0.10.0
libtpu: 0.0.40
codegen_flags: <defaults>
</compile_context>

<pallas_src>
import functools

import jax
import jax.numpy as jnp
import numpy as np
from jax.experimental import pallas as pl
from jax.experimental.pallas import tpu as pltpu


def _round_up(x, m):
    return ((x + m - 1) // m) * m


def _pad_rows(x, n_pad, value=0.0):
    n = x.shape[0]
    if n_pad == n:
        return x
    pad = jnp.full((n_pad - n,) + x.shape[1:], value, x.dtype)
    return jnp.concatenate([x, pad], axis=0)


# ----------------------------------------------------------------------------
# Kernel 1: per-coordinate min/max over all vertices (-> center, scale)
# Row-tiled; running min/max kept resident in VMEM scratch, written once at the
# last grid step. Padding rows replicate v[0] so they never affect min/max.
# ----------------------------------------------------------------------------
def _minmax_kernel(v_ref, min_ref, max_ref, mn_sc, mx_sc):
    i = pl.program_id(0)
    blk = v_ref[...]                      # (tm, 3)
    bmin = blk.min(axis=0, keepdims=True)
    bmax = blk.max(axis=0, keepdims=True)

    @pl.when(i == 0)
    def _():
        mn_sc[...] = bmin
        mx_sc[...] = bmax

    @pl.when(i > 0)
    def _():
        mn_sc[...] = jnp.minimum(mn_sc[...], bmin)
        mx_sc[...] = jnp.maximum(mx_sc[...], bmax)

    @pl.when(i == pl.num_programs(0) - 1)
    def _():
        min_ref[...] = mn_sc[...]
        max_ref[...] = mx_sc[...]


def vertex_bbox(v, *, tm=2048):
    n = v.shape[0]
    tm = min(tm, _round_up(n, 8))
    n_pad = _round_up(n, tm)
    if n_pad != n:
        v = jnp.concatenate(
            [v, jnp.broadcast_to(v[:1], (n_pad - n, 3))], axis=0)
    coord_min, coord_max = pl.pallas_call(
        _minmax_kernel,
        out_shape=(
            jax.ShapeDtypeStruct((1, 3), jnp.float32),
            jax.ShapeDtypeStruct((1, 3), jnp.float32),
        ),
        grid=(n_pad // tm,),
        in_specs=[pl.BlockSpec((tm, 3), lambda i: (i, 0))],
        out_specs=(
            pl.BlockSpec((1, 3), lambda i: (0, 0)),
            pl.BlockSpec((1, 3), lambda i: (0, 0)),
        ),
        scratch_shapes=[pltpu.VMEM((1, 3), jnp.float32),
                        pltpu.VMEM((1, 3), jnp.float32)],
        compiler_params=pltpu.CompilerParams(
            dimension_semantics=("arbitrary",)),
    )(v)
    center = 0.5 * (coord_max + coord_min)
    scale = coord_max - coord_min + 1e-6
    return center[0], scale[0]


# ----------------------------------------------------------------------------
# Kernel 2: clip-space projection  v_pos_clip[b,n,c] = [v_n | 1] . mvp[b,c,:]
# Lane-dense layout: vertices on the 128-lane axis, the 4*nview clip channels on
# sublanes.  out[b*4+c, n] = mvp[b,c,3] + sum_k v[n,k] * mvp[b,c,k].
# The 3-deep contraction is three VPU broadcast-FMAs (MXU would be ~0.1% used);
# no homogeneous pad is ever materialized in HBM.
# ----------------------------------------------------------------------------
def _clip_kernel(vt_ref, m_ref, out_ref):
    vt = vt_ref[...]        # (3, tn)   vertices on lanes
    m = m_ref[...]          # (4*nview, 4)
    acc = m[:, 3:4] + m[:, 0:1] * vt[0:1, :]
    acc = acc + m[:, 1:2] * vt[1:2, :]
    acc = acc + m[:, 2:3] * vt[2:3, :]
    out_ref[...] = acc


def project_vertices(v, mvp, *, tn=2048):
    n = v.shape[0]
    nview = mvp.shape[0]
    tn = min(tn, _round_up(n, 128))
    n_pad = _round_up(n, tn)
    vt = _pad_rows(v, n_pad).T                     # (3, n_pad) glue transpose
    m = mvp.reshape(nview * 4, 4)                  # m[b*4+c, k] = mvp[b,c,k]
    out2d = pl.pallas_call(
        _clip_kernel,
        out_shape=jax.ShapeDtypeStruct((4 * nview, n_pad), jnp.float32),
        grid=(n_pad // tn,),
        in_specs=[
            pl.BlockSpec((3, tn), lambda i: (0, i)),
            pl.BlockSpec((4 * nview, 4), lambda i: (0, 0)),
        ],
        out_specs=pl.BlockSpec((4 * nview, tn), lambda i: (0, i)),
        compiler_params=pltpu.CompilerParams(
            dimension_semantics=("parallel",)),
    )(vt, m)
    # (4V, n) -> (V, 4, n) -> (V, n, 4)  (layout plumbing in the wrapper)
    return jnp.transpose(out2d[:, :n].reshape(nview, 4, n), (0, 2, 1))


# ----------------------------------------------------------------------------
# Kernel 3: fragment shading — normalize normals, view directions, checker mask
#   frg_normal = F.normalize(frg_normal, dim=channel)
#   frg_dir    = F.normalize(frg_xyz - campos, dim=channel)
#   checker    = (frg_normal * -frg_dir).sum(channel) > 0
# Lane-dense pixel tiles; rsqrt on the EUP, channel sums as explicit
# x*x + y*y + z*z (no sublane XLU reduce), divides turned into muls.
# ----------------------------------------------------------------------------
def _frag_kernel(xyz_ref, nrm_ref, cam_ref, nrm_out_ref, dir_out_ref, chk_ref):
    eps = 1e-8
    xyz = xyz_ref[0]          # (3, TP)
    nrm = nrm_ref[0]          # (3, TP)
    cam = cam_ref[0]          # (3, 1), broadcasts over pixels

    n_ss = nrm[0:1] * nrm[0:1] + nrm[1:2] * nrm[1:2] + nrm[2:3] * nrm[2:3]
    n_inv = jax.lax.rsqrt(jnp.maximum(n_ss, eps * eps))
    nrm_n = nrm * n_inv

    d = xyz - cam
    d_ss = d[0:1] * d[0:1] + d[1:2] * d[1:2] + d[2:3] * d[2:3]
    d_inv = jax.lax.rsqrt(jnp.maximum(d_ss, eps * eps))
    d_n = d * d_inv

    nrm_out_ref[0] = nrm_n
    dir_out_ref[0] = d_n
    dot = (nrm_n[0:1] * d_n[0:1] + nrm_n[1:2] * d_n[1:2]
           + nrm_n[2:3] * d_n[2:3])
    chk_ref[0] = (-dot > 0.0).astype(jnp.float32)


def shade_fragments(frg_xyz, frg_nrm, campos, *, tp=4096):
    # frg_xyz, frg_nrm: (V, 3, P); campos: (V, 3)
    nview, _, npix = frg_xyz.shape
    tp = min(tp, _round_up(npix, 128))
    np_pad = _round_up(npix, tp)
    if np_pad != npix:
        padder = lambda x: jnp.pad(x, ((0, 0), (0, 0), (0, np_pad - npix)))
        frg_xyz, frg_nrm = padder(frg_xyz), padder(frg_nrm)
    cam = campos.reshape(nview, 3, 1)
    nrm_n, d_n, chk = pl.pallas_call(
        _frag_kernel,
        out_shape=(
            jax.ShapeDtypeStruct((nview, 3, np_pad), jnp.float32),
            jax.ShapeDtypeStruct((nview, 3, np_pad), jnp.float32),
            jax.ShapeDtypeStruct((nview, 1, np_pad), jnp.float32),
        ),
        grid=(nview, np_pad // tp),
        in_specs=[
            pl.BlockSpec((1, 3, tp), lambda v, p: (v, 0, p)),
            pl.BlockSpec((1, 3, tp), lambda v, p: (v, 0, p)),
            pl.BlockSpec((1, 3, 1), lambda v, p: (v, 0, 0)),
        ],
        out_specs=(
            pl.BlockSpec((1, 3, tp), lambda v, p: (v, 0, p)),
            pl.BlockSpec((1, 3, tp), lambda v, p: (v, 0, p)),
            pl.BlockSpec((1, 1, tp), lambda v, p: (v, 0, p)),
        ),
        compiler_params=pltpu.CompilerParams(
            dimension_semantics=("parallel", "parallel")),
    )(frg_xyz, frg_nrm, cam)
    return nrm_n[..., :npix], d_n[..., :npix], chk[..., :npix]


# ----------------------------------------------------------------------------
# Kernel 4: dense Gaussian-weighted curvature saliency, j-tiled.
# (clean dense form of saliency_computation; the original irregular neighbor-set
#  graph traversal has no Pallas equivalent and is itself buggy in the source)
#   - grid = (i_tiles, j_tiles), j last ("arbitrary"), VMEM accumulator (tm, 2)
#   - numerator and denominator fused: curv2 = [curv | 1] -> one (tm,2) dot
#   - ||vi - vj||^2 computed channel-by-channel on the VPU (no 3-deep MXU op,
#     no cancellation from the sq_i + sq_j - 2*cross form); exp on the EUP is
#     the binding unit, everything else is filler
#   - padded j rows carry curv2 = 0, so they contribute nothing
# ----------------------------------------------------------------------------
def _saliency_kernel(vi_ref, vt_ref, c2_ref, out_ref, acc_ref, *, inv_two_sigma2):
    j = pl.program_id(1)

    @pl.when(j == 0)
    def _():
        acc_ref[...] = jnp.zeros_like(acc_ref)

    vi = vi_ref[...]            # (tm, 3)
    vt = vt_ref[...]            # (3, tn)
    d0 = vi[:, 0:1] - vt[0:1, :]
    d1 = vi[:, 1:2] - vt[1:2, :]
    d2c = vi[:, 2:3] - vt[2:3, :]
    d2 = d0 * d0 + d1 * d1 + d2c * d2c
    w = jnp.exp(-d2 * inv_two_sigma2)                           # (tm, tn), EUP
    acc_ref[...] += jnp.dot(w, c2_ref[...],
                            preferred_element_type=jnp.float32)  # (tm, 2)

    @pl.when(j == pl.num_programs(1) - 1)
    def _():
        acc = acc_ref[...]
        out_ref[...] = acc[:, 0:1] / acc[:, 1:2]


def saliency_computation(v, mean_curvature, gaussian_sigma, *, tm=256, tn=1024):
    n = v.shape[0]
    tm = min(tm, _round_up(n, 8))
    tn = min(tn, _round_up(n, 128))
    n_i = _round_up(n, tm)
    n_j = _round_up(n, tn)

    vi = _pad_rows(v, n_i)                         # (n_i, 3)
    vt = _pad_rows(v, n_j).T                       # (3, n_j) — glue transpose
    curv = mean_curvature.reshape(n, 1)
    c2 = jnp.concatenate([curv, jnp.ones_like(curv)], axis=-1)   # (n, 2)
    c2 = _pad_rows(c2, n_j)                        # padded rows = 0 -> no effect

    kern = functools.partial(
        _saliency_kernel,
        inv_two_sigma2=1.0 / (2.0 * float(gaussian_sigma) ** 2))
    out = pl.pallas_call(
        kern,
        out_shape=jax.ShapeDtypeStruct((n_i, 1), jnp.float32),
        grid=(n_i // tm, n_j // tn),
        in_specs=[
            pl.BlockSpec((tm, 3), lambda i, j: (i, 0)),
            pl.BlockSpec((3, tn), lambda i, j: (0, j)),
            pl.BlockSpec((tn, 2), lambda i, j: (j, 0)),
        ],
        out_specs=pl.BlockSpec((tm, 1), lambda i, j: (i, 0)),
        scratch_shapes=[pltpu.VMEM((tm, 2), jnp.float32)],
        compiler_params=pltpu.CompilerParams(
            dimension_semantics=("parallel", "arbitrary")),
    )(vi, vt, c2)
    return out[:n]


# ----------------------------------------------------------------------------
# WarpingMachine forward (tensor-compute portion)
# ----------------------------------------------------------------------------
def warping_machine_forward(v, vn, mean_curvature, mvp, campos,
                            frg_xyz, frg_nrm, gaussian_sigma=0.5):
    # TODO(synk): trimesh mesh load / discrete curvature, nvdiffrast rasterize &
    # interpolate (which is where vn becomes frg_normal), bilinear mask
    # downsample, cv2 / torch.save file I/O are host-side ops with no Pallas
    # equivalent; fragments are supplied synthetically.
    del vn
    saliency = saliency_computation(v, mean_curvature, gaussian_sigma)
    center, scale = vertex_bbox(v)
    v_pos_clip = project_vertices(v, mvp)
    frg_normal, frg_dir, checker = shade_fragments(frg_xyz, frg_nrm, campos)
    return {
        "saliency": saliency,
        "center": center,
        "scale": scale,
        "v_pos_clip": v_pos_clip,
        "frg_normal": frg_normal,
        "frg_dir": frg_dir,
        "checker": checker,
    }


# ----------------------------------------------------------------------------
# Pure-JAX references for verification
# ----------------------------------------------------------------------------
def _ref_forward(v, curv, mvp, campos, frg_xyz, frg_nrm, sigma):
    d2 = jnp.sum((v[:, None, :] - v[None, :, :]) ** 2, axis=-1)
    w = jnp.exp(-d2 / (2.0 * sigma ** 2))
    sal = (w @ curv.reshape(-1, 1)) / jnp.sum(w, axis=-1, keepdims=True)
    cmax = v.max(axis=0)
    cmin = v.min(axis=0)
    center = 0.5 * (cmax + cmin)
    scale = cmax - cmin + 1e-6
    vh = jnp.concatenate([v, jnp.ones((v.shape[0], 1), jnp.float32)], -1)
    clip = jnp.einsum("nk,bjk->bnj", vh, mvp)
    eps = 1e-8
    nrm = frg_nrm / jnp.maximum(
        jnp.linalg.norm(frg_nrm, axis=1, keepdims=True), eps)
    d = frg_xyz - campos[:, :, None]
    d = d / jnp.maximum(jnp.linalg.norm(d, axis=1, keepdims=True), eps)
    dot = jnp.sum(nrm * (-d), axis=1, keepdims=True)
    chk = (dot > 0).astype(jnp.float32)
    return sal, center, scale, clip, nrm, d, chk, dot


if __name__ == "__main__":
    key = jax.random.PRNGKey(0)
    k1, k2, k3, k4, k5, k6, k7 = jax.random.split(key, 7)

    N = 200          # vertices (deliberately not a multiple of the tile sizes)
    V = 2            # views
    H = W = 16
    P = H * W        # pixels per view (lane-dense)
    sigma = 0.5

    v = jax.random.normal(k1, (N, 3), jnp.float32)
    vn = jax.random.normal(k2, (N, 3), jnp.float32)
    mean_curvature = jax.random.normal(k3, (N, 1), jnp.float32)
    mvp = jax.random.normal(k4, (V, 4, 4), jnp.float32)
    campos = jax.random.normal(k5, (V, 3), jnp.float32) * 3.0
    frg_xyz = jax.random.normal(k6, (V, 3, P), jnp.float32)
    frg_nrm = jax.random.normal(k7, (V, 3, P), jnp.float32)

    out = warping_machine_forward(v, vn, mean_curvature, mvp, campos,
                                  frg_xyz, frg_nrm, gaussian_sigma=sigma)
    out = jax.tree_util.tree_map(jax.block_until_ready, out)

    (ref_sal, ref_c, ref_s, ref_clip, ref_nrm, ref_dir, ref_chk,
     ref_dot) = _ref_forward(v, mean_curvature, mvp, campos,
                             frg_xyz, frg_nrm, sigma)

    np.testing.assert_allclose(np.asarray(out["saliency"]), np.asarray(ref_sal),
                               rtol=1e-4, atol=1e-5)
    np.testing.assert_allclose(np.asarray(out["center"]), np.asarray(ref_c),
                               rtol=1e-5, atol=1e-6)
    np.testing.assert_allclose(np.asarray(out["scale"]), np.asarray(ref_s),
                               rtol=1e-5, atol=1e-6)
    np.testing.assert_allclose(np.asarray(out["v_pos_clip"]), np.asarray(ref_clip),
                               rtol=1e-4, atol=1e-5)
    np.testing.assert_allclose(np.asarray(out["frg_normal"]), np.asarray(ref_nrm),
                               rtol=1e-4, atol=1e-5)
    np.testing.assert_allclose(np.asarray(out["frg_dir"]), np.asarray(ref_dir),
                               rtol=1e-4, atol=1e-5)
    # checker is a hard threshold; allow disagreement only where the dot product
    # is numerically ~0 (rsqrt vs sqrt/div rounding can flip the sign there).
    chk_mismatch = np.asarray(out["checker"]) != np.asarray(ref_chk)
    assert not np.any(chk_mismatch & (np.abs(np.asarray(ref_dot)) > 1e-4)), \
        "checker mismatch away from decision boundary"

    print("KERNEL_OK")
</pallas_src>

<mosaic_0001>
module attributes {stable_mosaic.version = 11 : i64} {
  func.func @_saliency_kernel(%arg0: i32, %arg1: i32, %arg2: memref<200x3xf32, #tpu.memory_space<vmem>>, %arg3: memref<3x256xf32, #tpu.memory_space<vmem>>, %arg4: memref<256x2xf32, #tpu.memory_space<vmem>>, %arg5: memref<200x1xf32, #tpu.memory_space<vmem>>, %arg6: memref<200x2xf32, #tpu.memory_space<vmem>>) attributes {dimension_semantics = [#tpu.dimension_semantics<parallel>, #tpu.dimension_semantics<arbitrary>], iteration_bounds = array<i64: 1, 1>, scalar_prefetch = 0 : i64, scratch_operands = 1 : i64, tpu.core_type = #tpu.core_type<tc>, window_params = [{transform_indices = @transform_0, window_bounds = array<i64: 200, 3>}, {transform_indices = @transform_1, window_bounds = array<i64: 3, 256>}, {transform_indices = @transform_2, window_bounds = array<i64: 256, 2>}, {transform_indices = @transform_3, window_bounds = array<i64: 200, 1>}]} {
    %c0_i32 = arith.constant 0 : i32
    %0 = arith.cmpi eq, %arg1, %c0_i32 : i32
    %1 = arith.extui %0 : i1 to i32
    %c0_i32_0 = arith.constant 0 : i32
    %2 = arith.cmpi ne, %1, %c0_i32_0 : i32
    scf.if %2 {
      %cst_14 = arith.constant 0.000000e+00 : f32
      %38 = vector.broadcast %cst_14 : f32 to vector<200x2xf32>
      %c0_15 = arith.constant 0 : index
      %c0_16 = arith.constant 0 : index
      %39 = vector.load %arg6[%c0_15, %c0_16] : memref<200x2xf32, #tpu.memory_space<vmem>>, vector<200x2xf32>
      tpu.vector_store %arg6[%c0_15, %c0_16], %38 {strides = array<i32>} : memref<200x2xf32, #tpu.memory_space<vmem>>, vector<200x2xf32>,
    } else {
    }
    %c0 = arith.constant 0 : index
    %c0_1 = arith.constant 0 : index
    %3 = vector.load %arg2[%c0, %c0_1] : memref<200x3xf32, #tpu.memory_space<vmem>>, vector<200x3xf32>
    %c0_2 = arith.constant 0 : index
    %c0_3 = arith.constant 0 : index
    %4 = vector.load %arg3[%c0_2, %c0_3] : memref<3x256xf32, #tpu.memory_space<vmem>>, vector<3x256xf32>
    %5 = vector.extract_strided_slice %3 {offsets = [0, 0], sizes = [200, 1], strides = [1, 1]} : vector<200x3xf32> to vector<200x1xf32>
    %6 = vector.extract_strided_slice %4 {offsets = [0, 0], sizes = [1, 256], strides = [1, 1]} : vector<3x256xf32> to vector<1x256xf32>
    %7 = vector.broadcast %5 : vector<200x1xf32> to vector<200x256xf32>
    %8 = vector.broadcast %6 : vector<1x256xf32> to vector<200x256xf32>
    %9 = arith.subf %7, %8 : vector<200x256xf32>
    %10 = vector.extract_strided_slice %3 {offsets = [0, 1], sizes = [200, 1], strides = [1, 1]} : vector<200x3xf32> to vector<200x1xf32>
    %11 = vector.extract_strided_slice %4 {offsets = [1, 0], sizes = [1, 256], strides = [1, 1]} : vector<3x256xf32> to vector<1x256xf32>
    %12 = vector.broadcast %10 : vector<200x1xf32> to vector<200x256xf32>
    %13 = vector.broadcast %11 : vector<1x256xf32> to vector<200x256xf32>
    %14 = arith.subf %12, %13 : vector<200x256xf32>
    %15 = vector.extract_strided_slice %3 {offsets = [0, 2], sizes = [200, 1], strides = [1, 1]} : vector<200x3xf32> to vector<200x1xf32>
    %16 = vector.extract_strided_slice %4 {offsets = [2, 0], sizes = [1, 256], strides = [1, 1]} : vector<3x256xf32> to vector<1x256xf32>
    %17 = vector.broadcast %15 : vector<200x1xf32> to vector<200x256xf32>
    %18 = vector.broadcast %16 : vector<1x256xf32> to vector<200x256xf32>
    %19 = arith.subf %17, %18 : vector<200x256xf32>
    %20 = arith.mulf %9, %9 : vector<200x256xf32>
    %21 = arith.mulf %14, %14 : vector<200x256xf32>
    %22 = arith.addf %20, %21 : vector<200x256xf32>
    %23 = arith.mulf %19, %19 : vector<200x256xf32>
    %24 = arith.addf %22, %23 : vector<200x256xf32>
    %cst = arith.constant 0.000000e+00 : f32
    %25 = vector.broadcast %cst : f32 to vector<200x256xf32>
    %26 = arith.subf %25, %24 : vector<200x256xf32>
    %cst_4 = arith.constant 2.000000e+00 : f32
    %27 = vector.broadcast %cst_4 : f32 to vector<200x256xf32>
    %28 = arith.mulf %26, %27 : vector<200x256xf32>
    %29 = math.exp %28 : vector<200x256xf32>
    %c0_5 = arith.constant 0 : index
    %c0_6 = arith.constant 0 : index
    %30 = vector.load %arg6[%c0_5, %c0_6] : memref<200x2xf32, #tpu.memory_space<vmem>>, vector<200x2xf32>
    %c0_7 = arith.constant 0 : index
    %c0_8 = arith.constant 0 : index
    %31 = vector.load %arg4[%c0_7, %c0_8] : memref<256x2xf32, #tpu.memory_space<vmem>>, vector<256x2xf32>
    %cst_9 = arith.constant dense<0.000000e+00> : vector<200x2xf32>
    %32 = tpu.matmul %29, %31, %cst_9 {dimension_numbers = #tpu.dot_dimension_numbers<[1], [0], [0], [1], [0, 0, 1, 1], [], []>} : vector<200x256xf32>, vector<256x2xf32>, vector<200x2xf32> -> vector<200x2xf32>
    %33 = arith.addf %30, %32 : vector<200x2xf32>
    %c0_10 = arith.constant 0 : index
    %c0_11 = arith.constant 0 : index
    %34 = vector.load %arg6[%c0_10, %c0_11] : memref<200x2xf32, #tpu.memory_space<vmem>>, vector<200x2xf32>
    tpu.vector_store %arg6[%c0_10, %c0_11], %33 {strides = array<i32>} : memref<200x2xf32, #tpu.memory_space<vmem>>, vector<200x2xf32>,
    %c0_i32_12 = arith.constant 0 : i32
    %35 = arith.cmpi eq, %arg1, %c0_i32_12 : i32
    %36 = arith.extui %35 : i1 to i32
    %c0_i32_13 = arith.constant 0 : i32
    %37 = arith.cmpi ne, %36, %c0_i32_13 : i32
    scf.if %37 {
      %c0_14 = arith.constant 0 : index
      %c0_15 = arith.constant 0 : index
      %38 = vector.load %arg6[%c0_14, %c0_15] : memref<200x2xf32, #tpu.memory_space<vmem>>, vector<200x2xf32>
      %39 = vector.extract_strided_slice %38 {offsets = [0, 0], sizes = [200, 1], strides = [1, 1]} : vector<200x2xf32> to vector<200x1xf32>
      %40 = vector.extract_strided_slice %38 {offsets = [0, 1], sizes = [200, 1], strides = [1, 1]} : vector<200x2xf32> to vector<200x1xf32>
      %41 = arith.divf %39, %40 : vector<200x1xf32>
      %c0_16 = arith.constant 0 : index
      %c0_17 = arith.constant 0 : index
      %42 = vector.load %arg5[%c0_16, %c0_17] : memref<200x1xf32, #tpu.memory_space<vmem>>, vector<200x1xf32>
      tpu.vector_store %arg5[%c0_16, %c0_17], %41 {strides = array<i32>} : memref<200x1xf32, #tpu.memory_space<vmem>>, vector<200x1xf32>,
    } else {
    }
    return
  }
  func.func @transform_0(%arg0: i32, %arg1: i32) -> (i32, i32) {
    %c0_i32 = arith.constant 0 : i32
    %c0_i32_0 = arith.constant 0 : i32
    return %arg0, %c0_i32 : i32, i32
  }
  func.func @transform_1(%arg0: i32, %arg1: i32) -> (i32, i32) {
    %c0_i32 = arith.constant 0 : i32
    %c0_i32_0 = arith.constant 0 : i32
    return %c0_i32, %arg1 : i32, i32
  }
  func.func @transform_2(%arg0: i32, %arg1: i32) -> (i32, i32) {
    %c0_i32 = arith.constant 0 : i32
    %c0_i32_0 = arith.constant 0 : i32
    return %arg1, %c0_i32 : i32, i32
  }
  func.func @transform_3(%arg0: i32, %arg1: i32) -> (i32, i32) {
    %c0_i32 = arith.constant 0 : i32
    %c0_i32_0 = arith.constant 0 : i32
    return %arg0, %c0_i32 : i32, i32
  }
}

</mosaic_0001>

<llo_original>
// kernel: tpu_custom_call.1
$region0: #{tpu_custom_call.1}
  #allocation0 [shape = 'u32[]', space=smem, size = 0x4, offset = 0x4, fixed_abs, tag = 'smem constant byte address 0x4 - core index']
  #allocation1 [shape = 'u32[144,128]{1,0:T(1,128)}', space=vmem, size = 0x12000, scoped, tag = 'internal scratch']
  #allocation2 [shape = 'f32[200,2]{1,0:T(8,128)}', space=vmem, size = 0x19000, scoped, tag = 'scratch operand']
  %s0 = inlined_call_operand.vmem [shape: f32[200,3], index: 0, kind: input, shape index: {}]
  %s1 = inlined_call_operand.vmem [shape: f32[3,256], index: 1, kind: input, shape index: {}]
  %s2 = inlined_call_operand.vmem [shape: f32[256,2], index: 2, kind: input, shape index: {}]
  %s3 = inlined_call_operand.vmem [shape: f32[200,1], index: 3, kind: output, shape index: {}]
  %s4 = sld [smem:[#allocation0]]
  $region30: #{tpu_custom_call.1} parent=0
    _
  %s6 = ssub.s32 1, %s4
  %s7 = scalar_select 0, %s6, %s4
  // Predicated region
  $region2: #{tpu_custom_call.1} parent=0 // pred_check
    _
  $region3: #{tpu_custom_call.1} parent=0 // pred_check_branch
    %9 = sbr.rel (0) target = $region5
  $region4: #{tpu_custom_call.1} parent=0 // pred_region
    _
  $region5: #{tpu_custom_call.1} parent=0 // pred_fallthru
    _
  // Predicated region
  $region6: #{tpu_custom_call.1} parent=0 // pred_check
    _
  $region7: #{tpu_custom_call.1} parent=0 // pred_check_branch
    %11 = sbr.rel (0) target = $region9
  $region8: #{tpu_custom_call.1} parent=0 // pred_region
    _
  $region9: #{tpu_custom_call.1} parent=0 // pred_fallthru
    _
  // Predicated region
  $region10: #{tpu_custom_call.1} parent=0 // pred_check
    _
  $region11: #{tpu_custom_call.1} parent=0 // pred_check_branch
    %13 = sbr.rel (0) target = $region13
  $region12: #{tpu_custom_call.1} parent=0 // pred_region
    _
  $region13: #{tpu_custom_call.1} parent=0 // pred_fallthru
    _
  %p14 = scmp.eq.s32.totalorder 0, 0
  // Predicated region
  $region14: #{tpu_custom_call.1} parent=0 // pred_check
    %p15 = pneg %p14
  $region15: #{tpu_custom_call.1} parent=0 // pred_check_branch
    %17 = sbr.rel (%p15) target = $region17
  $region16: #{tpu_custom_call.1} parent=0 // pred_region
    %vm18 = vcmask 15360
    %19 = vst.msk [vmem:[#allocation2] sm:$0xff] %vm18, 0.0
    %20 = vst.msk [vmem:[#allocation2 + $0x8] sm:$0xff] %vm18, 0.0
    %21 = vst.msk [vmem:[#allocation2 + $0x10] sm:$0xff] %vm18, 0.0
    %22 = vst.msk [vmem:[#allocation2 + $0x18] sm:$0xff] %vm18, 0.0
    %23 = vst.msk [vmem:[#allocation2 + $0x20] sm:$0xff] %vm18, 0.0
    %24 = vst.msk [vmem:[#allocation2 + $0x28] sm:$0xff] %vm18, 0.0
    %25 = vst.msk [vmem:[#allocation2 + $0x30] sm:$0xff] %vm18, 0.0
    %26 = vst.msk [vmem:[#allocation2 + $0x38] sm:$0xff] %vm18, 0.0
    %27 = vst.msk [vmem:[#allocation2 + $0x40] sm:$0xff] %vm18, 0.0
    %28 = vst.msk [vmem:[#allocation2 + $0x48] sm:$0xff] %vm18, 0.0
    %29 = vst.msk [vmem:[#allocation2 + $0x50] sm:$0xff] %vm18, 0.0
    %30 = vst.msk [vmem:[#allocation2 + $0x58] sm:$0xff] %vm18, 0.0
    %31 = vst.msk [vmem:[#allocation2 + $0x60] sm:$0xff] %vm18, 0.0
    %32 = vst.msk [vmem:[#allocation2 + $0x68] sm:$0xff] %vm18, 0.0
    %33 = vst.msk [vmem:[#allocation2 + $0x70] sm:$0xff] %vm18, 0.0
    %34 = vst.msk [vmem:[#allocation2 + $0x78] sm:$0xff] %vm18, 0.0
    %35 = vst.msk [vmem:[#allocation2 + $0x80] sm:$0xff] %vm18, 0.0
    %36 = vst.msk [vmem:[#allocation2 + $0x88] sm:$0xff] %vm18, 0.0
    %37 = vst.msk [vmem:[#allocation2 + $0x90] sm:$0xff] %vm18, 0.0
    %38 = vst.msk [vmem:[#allocation2 + $0x98] sm:$0xff] %vm18, 0.0
    %39 = vst.msk [vmem:[#allocation2 + $0xa0] sm:$0xff] %vm18, 0.0
    %40 = vst.msk [vmem:[#allocation2 + $0xa8] sm:$0xff] %vm18, 0.0
    %41 = vst.msk [vmem:[#allocation2 + $0xb0] sm:$0xff] %vm18, 0.0
    %42 = vst.msk [vmem:[#allocation2 + $0xb8] sm:$0xff] %vm18, 0.0
    %43 = vst.msk [vmem:[#allocation2 + $0xc0] sm:$0xff] %vm18, 0.0
  $region17: #{tpu_custom_call.1} parent=0 // pred_fallthru
    _
  %v44 = vld [vmem:[%s0] sm:$0xff]
  %v45 = vld [vmem:[%s0 + $0x8] sm:$0xff]
  %v46 = vld [vmem:[%s0 + $0x10] sm:$0xff]
  %v47 = vld [vmem:[%s0 + $0x18] sm:$0xff]
  %v48 = vld [vmem:[%s0 + $0x20] sm:$0xff]
  %v49 = vld [vmem:[%s0 + $0x28] sm:$0xff]
  %v50 = vld [vmem:[%s0 + $0x30] sm:$0xff]
  %v51 = vld [vmem:[%s0 + $0x38] sm:$0xff]
  %v52 = vld [vmem:[%s0 + $0x40] sm:$0xff]
  %v53 = vld [vmem:[%s0 + $0x48] sm:$0xff]
  %v54 = vld [vmem:[%s0 + $0x50] sm:$0xff]
  %v55 = vld [vmem:[%s0 + $0x58] sm:$0xff]
  %v56 = vld [vmem:[%s0 + $0x60] sm:$0xff]
  %v57 = vld [vmem:[%s0 + $0x68] sm:$0xff]
  %v58 = vld [vmem:[%s0 + $0x70] sm:$0xff]
  %v59 = vld [vmem:[%s0 + $0x78] sm:$0xff]
  %v60 = vld [vmem:[%s0 + $0x80] sm:$0xff]
  %v61 = vld [vmem:[%s0 + $0x88] sm:$0xff]
  %v62 = vld [vmem:[%s0 + $0x90] sm:$0xff]
  %v63 = vld [vmem:[%s0 + $0x98] sm:$0xff]
  %v64 = vld [vmem:[%s0 + $0xa0] sm:$0xff]
  %v65 = vld [vmem:[%s0 + $0xa8] sm:$0xff]
  %v66 = vld [vmem:[%s0 + $0xb0] sm:$0xff]
  %v67 = vld [vmem:[%s0 + $0xb8] sm:$0xff]
  %v68 = vld [vmem:[%s0 + $0xc0] sm:$0xff]
  %v69 = vld [vmem:[%s1] sm:$0x77]
  %71 = vset.pattern.permute.xlu0 0
  %72 = vperm.xlu0 %71, %v44
  %v73 = vpop.permute.xlu0 %72
  %76 = vset.pattern.permute.xlu0 0
  %77 = vperm.xlu0 %76, %v45
  %v78 = vpop.permute.xlu0 %77
  %81 = vset.pattern.permute.xlu0 0
  %82 = vperm.xlu0 %81, %v46
  %v83 = vpop.permute.xlu0 %82
  %86 = vset.pattern.permute.xlu0 0
  %87 = vperm.xlu0 %86, %v47
  %v88 = vpop.permute.xlu0 %87
  %91 = vset.pattern.permute.xlu0 0
  %92 = vperm.xlu0 %91, %v48
  %v93 = vpop.permute.xlu0 %92
  %96 = vset.pattern.permute.xlu0 0
  %97 = vperm.xlu0 %96, %v49
  %v98 = vpop.permute.xlu0 %97
  %101 = vset.pattern.permute.xlu0 0
  %102 = vperm.xlu0 %101, %v50
  %v103 = vpop.permute.xlu0 %102
  %106 = vset.pattern.permute.xlu0 0
  %107 = vperm.xlu0 %106, %v51
  %v108 = vpop.permute.xlu0 %107
  %111 = vset.pattern.permute.xlu0 0
  %112 = vperm.xlu0 %111, %v52
  %v113 = vpop.permute.xlu0 %112
  %116 = vset.pattern.permute.xlu0 0
  %117 = vperm.xlu0 %116, %v53
  %v118 = vpop.permute.xlu0 %117
  %121 = vset.pattern.permute.xlu0 0
  %122 = vperm.xlu0 %121, %v54
  %v123 = vpop.permute.xlu0 %122
  %126 = vset.pattern.permute.xlu0 0
  %127 = vperm.xlu0 %126, %v55
  %v128 = vpop.permute.xlu0 %127
  %131 = vset.pattern.permute.xlu0 0
  %132 = vperm.xlu0 %131, %v56
  %v133 = vpop.permute.xlu0 %132
  %136 = vset.pattern.permute.xlu0 0
  %137 = vperm.xlu0 %136, %v57
  %v138 = vpop.permute.xlu0 %137
  %141 = vset.pattern.permute.xlu0 0
  %142 = vperm.xlu0 %141, %v58
  %v143 = vpop.permute.xlu0 %142
  %146 = vset.pattern.permute.xlu0 0
  %147 = vperm.xlu0 %146, %v59
  %v148 = vpop.permute.xlu0 %147
  %151 = vset.pattern.permute.xlu0 0
  %152 = vperm.xlu0 %151, %v60
  %v153 = vpop.permute.xlu0 %152
  %156 = vset.pattern.permute.xlu0 0
  %157 = vperm.xlu0 %156, %v61
  %v158 = vpop.permute.xlu0 %157
  %161 = vset.pattern.permute.xlu0 0
  %162 = vperm.xlu0 %161, %v62
  %v163 = vpop.permute.xlu0 %162
  %166 = vset.pattern.permute.xlu0 0
  %167 = vperm.xlu0 %166, %v63
  %v168 = vpop.permute.xlu0 %167
  %171 = vset.pattern.permute.xlu0 0
  %172 = vperm.xlu0 %171, %v64
  %v173 = vpop.permute.xlu0 %172
  %176 = vset.pattern.permute.xlu0 0
  %177 = vperm.xlu0 %176, %v65
  %v178 = vpop.permute.xlu0 %177
  %181 = vset.pattern.permute.xlu0 0
  %182 = vperm.xlu0 %181, %v66
  %v183 = vpop.permute.xlu0 %182
  %186 = vset.pattern.permute.xlu0 0
  %187 = vperm.xlu0 %186, %v67
  %v188 = vpop.permute.xlu0 %187
  %191 = vset.pattern.permute.xlu0 0
  %192 = vperm.xlu0 %191, %v68
  %v193 = vpop.permute.xlu0 %192
  %v196 = vlaneseq
  %v197 = vshrl.u32 %v196, 7
  %v198 = vsub.s32 0, %v197
  %v199 = vrot.slane %v69, %v198
  %v200 = vlaneseq
  %v201 = vshrl.u32 %v200, 7
  %v202 = vsub.s32 4, %v201
  %v203 = vrot.slane %v69, %v202
  %v206 = vlaneseq
  %v207 = vshrl.u32 %v206, 7
  %v208 = vsub.s32 0, %v207
  %v209 = vrot.slane %v199, %v208
  %v210 = vlaneseq
  %v211 = vshrl.u32 %v210, 7
  %v212 = vsub.s32 0, %v211
  %v213 = vrot.slane %v203, %v212
  %v214 = vsub.f32 %v73, %v209
  %v215 = vsub.f32 %v73, %v213
  %v216 = vsub.f32 %v78, %v209
  %v217 = vsub.f32 %v78, %v213
  %v218 = vsub.f32 %v83, %v209
  %v219 = vsub.f32 %v83, %v213
  %v220 = vsub.f32 %v88, %v209
  %v221 = vsub.f32 %v88, %v213
  %v222 = vsub.f32 %v93, %v209
  %v223 = vsub.f32 %v93, %v213
  %v224 = vsub.f32 %v98, %v209
  %v225 = vsub.f32 %v98, %v213
  %v226 = vsub.f32 %v103, %v209
  %v227 = vsub.f32 %v103, %v213
  %v228 = vsub.f32 %v108, %v209
  %v229 = vsub.f32 %v108, %v213
  %v230 = vsub.f32 %v113, %v209
  %v231 = vsub.f32 %v113, %v213
  %v232 = vsub.f32 %v118, %v209
  %v233 = vsub.f32 %v118, %v213
  %v234 = vsub.f32 %v123, %v209
  %v235 = vsub.f32 %v123, %v213
  %v236 = vsub.f32 %v128, %v209
  %v237 = vsub.f32 %v128, %v213
  %v238 = vsub.f32 %v133, %v209
  %v239 = vsub.f32 %v133, %v213
  %v240 = vsub.f32 %v138, %v209
  %v241 = vsub.f32 %v138, %v213
  %v242 = vsub.f32 %v143, %v209
  %v243 = vsub.f32 %v143, %v213
  %v244 = vsub.f32 %v148, %v209
  %v245 = vsub.f32 %v148, %v213
  %v246 = vsub.f32 %v153, %v209
  %v247 = vsub.f32 %v153, %v213
  %v248 = vsub.f32 %v158, %v209
  %v249 = vsub.f32 %v158, %v213
  %v250 = vsub.f32 %v163, %v209
  %v251 = vsub.f32 %v163, %v213
  %v252 = vsub.f32 %v168, %v209
  %v253 = vsub.f32 %v168, %v213
  %v254 = vsub.f32 %v173, %v209
  %v255 = vsub.f32 %v173, %v213
  %v256 = vsub.f32 %v178, %v209
  %v257 = vsub.f32 %v178, %v213
  %v258 = vsub.f32 %v183, %v209
  %v259 = vsub.f32 %v183, %v213
  %v260 = vsub.f32 %v188, %v209
  %v261 = vsub.f32 %v188, %v213
  %v262 = vsub.f32 %v193, %v209
  %v263 = vsub.f32 %v193, %v213
  %264 = vset.pattern.permute.xlu0 1
  %265 = vperm.xlu0 %264, %v44
  %v266 = vpop.permute.xlu0 %265
  %268 = vset.pattern.permute.xlu0 1
  %269 = vperm.xlu0 %268, %v45
  %v270 = vpop.permute.xlu0 %269
  %272 = vset.pattern.permute.xlu0 1
  %273 = vperm.xlu0 %272, %v46
  %v274 = vpop.permute.xlu0 %273
  %276 = vset.pattern.permute.xlu0 1
  %277 = vperm.xlu0 %276, %v47
  %v278 = vpop.permute.xlu0 %277
  %280 = vset.pattern.permute.xlu0 1
  %281 = vperm.xlu0 %280, %v48
  %v282 = vpop.permute.xlu0 %281
  %284 = vset.pattern.permute.xlu0 1
  %285 = vperm.xlu0 %284, %v49
  %v286 = vpop.permute.xlu0 %285
  %288 = vset.pattern.permute.xlu0 1
  %289 = vperm.xlu0 %288, %v50
  %v290 = vpop.permute.xlu0 %289
  %292 = vset.pattern.permute.xlu0 1
  %293 = vperm.xlu0 %292, %v51
  %v294 = vpop.permute.xlu0 %293
  %296 = vset.pattern.permute.xlu0 1
  %297 = vperm.xlu0 %296, %v52
  %v298 = vpop.permute.xlu0 %297
  %300 = vset.pattern.permute.xlu0 1
  %301 = vperm.xlu0 %300, %v53
  %v302 = vpop.permute.xlu0 %301
  %304 = vset.pattern.permute.xlu0 1
  %305 = vperm.xlu0 %304, %v54
  %v306 = vpop.permute.xlu0 %305
  %308 = vset.pattern.permute.xlu0 1
  %309 = vperm.xlu0 %308, %v55
  %v310 = vpop.permute.xlu0 %309
  %312 = vset.pattern.permute.xlu0 1
  %313 = vperm.xlu0 %312, %v56
  %v314 = vpop.permute.xlu0 %313
  %316 = vset.pattern.permute.xlu0 1
  %317 = vperm.xlu0 %316, %v57
  %v318 = vpop.permute.xlu0 %317
  %320 = vset.pattern.permute.xlu0 1
  %321 = vperm.xlu0 %320, %v58
  %v322 = vpop.permute.xlu0 %321
  %324 = vset.pattern.permute.xlu0 1
  %325 = vperm.xlu0 %324, %v59
  %v326 = vpop.permute.xlu0 %325
  %328 = vset.pattern.permute.xlu0 1
  %329 = vperm.xlu0 %328, %v60
  %v330 = vpop.permute.xlu0 %329
  %332 = vset.pattern.permute.xlu0 1
  %333 = vperm.xlu0 %332, %v61
  %v334 = vpop.permute.xlu0 %333
  %336 = vset.pattern.permute.xlu0 1
  %337 = vperm.xlu0 %336, %v62
  %v338 = vpop.permute.xlu0 %337
  %340 = vset.pattern.permute.xlu0 1
  %341 = vperm.xlu0 %340, %v63
  %v342 = vpop.permute.xlu0 %341
  %344 = vset.pattern.permute.xlu0 1
  %345 = vperm.xlu0 %344, %v64
  %v346 = vpop.permute.xlu0 %345
  %348 = vset.pattern.permute.xlu0 1
  %349 = vperm.xlu0 %348, %v65
  %v350 = vpop.permute.xlu0 %349
  %352 = vset.pattern.permute.xlu0 1
  %353 = vperm.xlu0 %352, %v66
  %v354 = vpop.permute.xlu0 %353
  %356 = vset.pattern.permute.xlu0 1
  %357 = vperm.xlu0 %356, %v67
  %v358 = vpop.permute.xlu0 %357
  %360 = vset.pattern.permute.xlu0 1
  %361 = vperm.xlu0 %360, %v68
  %v362 = vpop.permute.xlu0 %361
  %v364 = vlaneseq
  %v365 = vshrl.u32 %v364, 7
  %v366 = vsub.s32 1, %v365
  %v367 = vrot.slane %v69, %v366
  %v368 = vlaneseq
  %v369 = vshrl.u32 %v368, 7
  %v370 = vsub.s32 5, %v369
  %v371 = vrot.slane %v69, %v370
  %v374 = vlaneseq
  %v375 = vshrl.u32 %v374, 7
  %v376 = vsub.s32 1, %v375
  %v377 = vrot.slane %v367, %v376
  %v378 = vlaneseq
  %v379 = vshrl.u32 %v378, 7
  %v380 = vsub.s32 1, %v379
  %v381 = vrot.slane %v371, %v380
  %v382 = vsub.f32 %v266, %v377
  %v383 = vsub.f32 %v266, %v381
  %v384 = vsub.f32 %v270, %v377
  %v385 = vsub.f32 %v270, %v381
  %v386 = vsub.f32 %v274, %v377
  %v387 = vsub.f32 %v274, %v381
  %v388 = vsub.f32 %v278, %v377
  %v389 = vsub.f32 %v278, %v381
  %v390 = vsub.f32 %v282, %v377
  %v391 = vsub.f32 %v282, %v381
  %v392 = vsub.f32 %v286, %v377
  %v393 = vsub.f32 %v286, %v381
  %v394 = vsub.f32 %v290, %v377
  %v395 = vsub.f32 %v290, %v381
  %v396 = vsub.f32 %v294, %v377
  %v397 = vsub.f32 %v294, %v381
  %v398 = vsub.f32 %v298, %v377
  %v399 = vsub.f32 %v298, %v381
  %v400 = vsub.f32 %v302, %v377
  %v401 = vsub.f32 %v302, %v381
  %v402 = vsub.f32 %v306, %v377
  %v403 = vsub.f32 %v306, %v381
  %v404 = vsub.f32 %v310, %v377
  %v405 = vsub.f32 %v310, %v381
  %v406 = vsub.f32 %v314, %v377
  %v407 = vsub.f32 %v314, %v381
  %v408 = vsub.f32 %v318, %v377
  %v409 = vsub.f32 %v318, %v381
  %v410 = vsub.f32 %v322, %v377
  %v411 = vsub.f32 %v322, %v381
  %v412 = vsub.f32 %v326, %v377
  %v413 = vsub.f32 %v326, %v381
  %v414 = vsub.f32 %v330, %v377
  %v415 = vsub.f32 %v330, %v381
  %v416 = vsub.f32 %v334, %v377
  %v417 = vsub.f32 %v334, %v381
  %v418 = vsub.f32 %v338, %v377
  %v419 = vsub.f32 %v338, %v381
  %v420 = vsub.f32 %v342, %v377
  %v421 = vsub.f32 %v342, %v381
  %v422 = vsub.f32 %v346, %v377
  %v423 = vsub.f32 %v346, %v381
  %v424 = vsub.f32 %v350, %v377
  %v425 = vsub.f32 %v350, %v381
  %v426 = vsub.f32 %v354, %v377
  %v427 = vsub.f32 %v354, %v381
  %v428 = vsub.f32 %v358, %v377
  %v429 = vsub.f32 %v358, %v381
  %v430 = vsub.f32 %v362, %v377
  %v431 = vsub.f32 %v362, %v381
  %432 = vset.pattern.permute.xlu0 2
  %433 = vperm.xlu0 %432, %v44
  %v434 = vpop.permute.xlu0 %433
  %436 = vset.pattern.permute.xlu0 2
  %437 = vperm.xlu0 %436, %v45
  %v438 = vpop.permute.xlu0 %437
  %440 = vset.pattern.permute.xlu0 2
  %441 = vperm.xlu0 %440, %v46
  %v442 = vpop.permute.xlu0 %441
  %444 = vset.pattern.permute.xlu0 2
  %445 = vperm.xlu0 %444, %v47
  %v446 = vpop.permute.xlu0 %445
  %448 = vset.pattern.permute.xlu0 2
  %449 = vperm.xlu0 %448, %v48
  %v450 = vpop.permute.xlu0 %449
  %452 = vset.pattern.permute.xlu0 2
  %453 = vperm.xlu0 %452, %v49
  %v454 = vpop.permute.xlu0 %453
  %456 = vset.pattern.permute.xlu0 2
  %457 = vperm.xlu0 %456, %v50
  %v458 = vpop.permute.xlu0 %457
  %460 = vset.pattern.permute.xlu0 2
  %461 = vperm.xlu0 %460, %v51
  %v462 = vpop.permute.xlu0 %461
  %464 = vset.pattern.permute.xlu0 2
  %465 = vperm.xlu0 %464, %v52
  %v466 = vpop.permute.xlu0 %465
  %468 = vset.pattern.permute.xlu0 2
  %469 = vperm.xlu0 %468, %v53
  %v470 = vpop.permute.xlu0 %469
  %472 = vset.pattern.permute.xlu0 2
  %473 = vperm.xlu0 %472, %v54
  %v474 = vpop.permute.xlu0 %473
  %476 = vset.pattern.permute.xlu0 2
  %477 = vperm.xlu0 %476, %v55
  %v478 = vpop.permute.xlu0 %477
  %480 = vset.pattern.permute.xlu0 2
  %481 = vperm.xlu0 %480, %v56
  %v482 = vpop.permute.xlu0 %481
  %484 = vset.pattern.permute.xlu0 2
  %485 = vperm.xlu0 %484, %v57
  %v486 = vpop.permute.xlu0 %485
  %488 = vset.pattern.permute.xlu0 2
  %489 = vperm.xlu0 %488, %v58
  %v490 = vpop.permute.xlu0 %489
  %492 = vset.pattern.permute.xlu0 2
  %493 = vperm.xlu0 %492, %v59
  %v494 = vpop.permute.xlu0 %493
  %496 = vset.pattern.permute.xlu0 2
  %497 = vperm.xlu0 %496, %v60
  %v498 = vpop.permute.xlu0 %497
  %500 = vset.pattern.permute.xlu0 2
  %501 = vperm.xlu0 %500, %v61
  %v502 = vpop.permute.xlu0 %501
  %504 = vset.pattern.permute.xlu0 2
  %505 = vperm.xlu0 %504, %v62
  %v506 = vpop.permute.xlu0 %505
  %508 = vset.pattern.permute.xlu0 2
  %509 = vperm.xlu0 %508, %v63
  %v510 = vpop.permute.xlu0 %509
  %512 = vset.pattern.permute.xlu0 2
  %513 = vperm.xlu0 %512, %v64
  %v514 = vpop.permute.xlu0 %513
  %516 = vset.pattern.permute.xlu0 2
  %517 = vperm.xlu0 %516, %v65
  %v518 = vpop.permute.xlu0 %517
  %520 = vset.pattern.permute.xlu0 2
  %521 = vperm.xlu0 %520, %v66
  %v522 = vpop.permute.xlu0 %521
  %524 = vset.pattern.permute.xlu0 2
  %525 = vperm.xlu0 %524, %v67
  %v526 = vpop.permute.xlu0 %525
  %528 = vset.pattern.permute.xlu0 2
  %529 = vperm.xlu0 %528, %v68
  %v530 = vpop.permute.xlu0 %529
  %v532 = vlaneseq
  %v533 = vshrl.u32 %v532, 7
  %v534 = vsub.s32 2, %v533
  %v535 = vrot.slane %v69, %v534
  %v536 = vlaneseq
  %v537 = vshrl.u32 %v536, 7
  %v538 = vsub.s32 6, %v537
  %v539 = vrot.slane %v69, %v538
  %v542 = vlaneseq
  %v543 = vshrl.u32 %v542, 7
  %v544 = vsub.s32 2, %v543
  %v545 = vrot.slane %v535, %v544
  %v546 = vlaneseq
  %v547 = vshrl.u32 %v546, 7
  %v548 = vsub.s32 2, %v547
  %v549 = vrot.slane %v539, %v548
  %v550 = vsub.f32 %v434, %v545
  %v551 = vsub.f32 %v434, %v549
  %v552 = vsub.f32 %v438, %v545
  %v553 = vsub.f32 %v438, %v549
  %v554 = vsub.f32 %v442, %v545
  %v555 = vsub.f32 %v442, %v549
  %v556 = vsub.f32 %v446, %v545
  %v557 = vsub.f32 %v446, %v549
  %v558 = vsub.f32 %v450, %v545
  %v559 = vsub.f32 %v450, %v549
  %v560 = vsub.f32 %v454, %v545
  %v561 = vsub.f32 %v454, %v549
  %v562 = vsub.f32 %v458, %v545
  %v563 = vsub.f32 %v458, %v549
  %v564 = vsub.f32 %v462, %v545
  %v565 = vsub.f32 %v462, %v549
  %v566 = vsub.f32 %v466, %v545
  %v567 = vsub.f32 %v466, %v549
  %v568 = vsub.f32 %v470, %v545
  %v569 = vsub.f32 %v470, %v549
  %v570 = vsub.f32 %v474, %v545
  %v571 = vsub.f32 %v474, %v549
  %v572 = vsub.f32 %v478, %v545
  %v573 = vsub.f32 %v478, %v549
  %v574 = vsub.f32 %v482, %v545
  %v575 = vsub.f32 %v482, %v549
  %v576 = vsub.f32 %v486, %v545
  %v577 = vsub.f32 %v486, %v549
  %v578 = vsub.f32 %v490, %v545
  %v579 = vsub.f32 %v490, %v549
  %v580 = vsub.f32 %v494, %v545
  %v581 = vsub.f32 %v494, %v549
  %v582 = vsub.f32 %v498, %v545
  %v583 = vsub.f32 %v498, %v549
  %v584 = vsub.f32 %v502, %v545
  %v585 = vsub.f32 %v502, %v549
  %v586 = vsub.f32 %v506, %v545
  %v587 = vsub.f32 %v506, %v549
  %v588 = vsub.f32 %v510, %v545
  %v589 = vsub.f32 %v510, %v549
  %v590 = vsub.f32 %v514, %v545
  %v591 = vsub.f32 %v514, %v549
  %v592 = vsub.f32 %v518, %v545
  %v593 = vsub.f32 %v518, %v549
  %v594 = vsub.f32 %v522, %v545
  %v595 = vsub.f32 %v522, %v549
  %v596 = vsub.f32 %v526, %v545
  %v597 = vsub.f32 %v526, %v549
  %v598 = vsub.f32 %v530, %v545
  %v599 = vsub.f32 %v530, %v549
  %v600 = vmul.f32 %v214, %v214
  %v601 = vmul.f32 %v215, %v215
  %v602 = vmul.f32 %v216, %v216
  %v603 = vmul.f32 %v217, %v217
  %v604 = vmul.f32 %v218, %v218
  %v605 = vmul.f32 %v219, %v219
  %v606 = vmul.f32 %v220, %v220
  %v607 = vmul.f32 %v221, %v221
  %v608 = vmul.f32 %v222, %v222
  %v609 = vmul.f32 %v223, %v223
  %v610 = vmul.f32 %v224, %v224
  %v611 = vmul.f32 %v225, %v225
  %v612 = vmul.f32 %v226, %v226
  %v613 = vmul.f32 %v227, %v227
  %v614 = vmul.f32 %v228, %v228
  %v615 = vmul.f32 %v229, %v229
  %v616 = vmul.f32 %v230, %v230
  %v617 = vmul.f32 %v231, %v231
  %v618 = vmul.f32 %v232, %v232
  %v619 = vmul.f32 %v233, %v233
  %v620 = vmul.f32 %v234, %v234
  %v621 = vmul.f32 %v235, %v235
  %v622 = vmul.f32 %v236, %v236
  %v623 = vmul.f32 %v237, %v237
  %v624 = vmul.f32 %v238, %v238
  %v625 = vmul.f32 %v239, %v239
  %v626 = vmul.f32 %v240, %v240
  %v627 = vmul.f32 %v241, %v241
  %v628 = vmul.f32 %v242, %v242
  %v629 = vmul.f32 %v243, %v243
  %v630 = vmul.f32 %v244, %v244
  %v631 = vmul.f32 %v245, %v245
  %v632 = vmul.f32 %v246, %v246
  %v633 = vmul.f32 %v247, %v247
  %v634 = vmul.f32 %v248, %v248
  %v635 = vmul.f32 %v249, %v249
  %v636 = vmul.f32 %v250, %v250
  %v637 = vmul.f32 %v251, %v251
  %v638 = vmul.f32 %v252, %v252
  %v639 = vmul.f32 %v253, %v253
  %v640 = vmul.f32 %v254, %v254
  %v641 = vmul.f32 %v255, %v255
  %v642 = vmul.f32 %v256, %v256
  %v643 = vmul.f32 %v257, %v257
  %v644 = vmul.f32 %v258, %v258
  %v645 = vmul.f32 %v259, %v259
  %v646 = vmul.f32 %v260, %v260
  %v647 = vmul.f32 %v261, %v261
  %v648 = vmul.f32 %v262, %v262
  %v649 = vmul.f32 %v263, %v263
  %v650 = vmul.f32 %v382, %v382
  %v651 = vmul.f32 %v383, %v383
  %v652 = vmul.f32 %v384, %v384
  %v653 = vmul.f32 %v385, %v385
  %v654 = vmul.f32 %v386, %v386
  %v655 = vmul.f32 %v387, %v387
  %v656 = vmul.f32 %v388, %v388
  %v657 = vmul.f32 %v389, %v389
  %v658 = vmul.f32 %v390, %v390
  %v659 = vmul.f32 %v391, %v391
  %v660 = vmul.f32 %v392, %v392
  %v661 = vmul.f32 %v393, %v393
  %v662 = vmul.f32 %v394, %v394
  %v663 = vmul.f32 %v395, %v395
  %v664 = vmul.f32 %v396, %v396
  %v665 = vmul.f32 %v397, %v397
  %v666 = vmul.f32 %v398, %v398
  %v667 = vmul.f32 %v399, %v399
  %v668 = vmul.f32 %v400, %v400
  %v669 = vmul.f32 %v401, %v401
  %v670 = vmul.f32 %v402, %v402
  %v671 = vmul.f32 %v403, %v403
  %v672 = vmul.f32 %v404, %v404
  %v673 = vmul.f32 %v405, %v405
  %v674 = vmul.f32 %v406, %v406
  %v675 = vmul.f32 %v407, %v407
  %v676 = vmul.f32 %v408, %v408
  %v677 = vmul.f32 %v409, %v409
  %v678 = vmul.f32 %v410, %v410
  %v679 = vmul.f32 %v411, %v411
  %v680 = vmul.f32 %v412, %v412
  %v681 = vmul.f32 %v413, %v413
  %v682 = vmul.f32 %v414, %v414
  %v683 = vmul.f32 %v415, %v415
  %v684 = vmul.f32 %v416, %v416
  %v685 = vmul.f32 %v417, %v417
  %v686 = vmul.f32 %v418, %v418
  %v687 = vmul.f32 %v419, %v419
  %v688 = vmul.f32 %v420, %v420
  %v689 = vmul.f32 %v421, %v421
  %v690 = vmul.f32 %v422, %v422
  %v691 = vmul.f32 %v423, %v423
  %v692 = vmul.f32 %v424, %v424
  %v693 = vmul.f32 %v425, %v425
  %v694 = vmul.f32 %v426, %v426
  %v695 = vmul.f32 %v427, %v427
  %v696 = vmul.f32 %v428, %v428
  %v697 = vmul.f32 %v429, %v429
  %v698 = vmul.f32 %v430, %v430
  %v699 = vmul.f32 %v431, %v431
  %v700 = vadd.f32 %v600, %v650
  %v701 = vadd.f32 %v601, %v651
  %v702 = vadd.f32 %v602, %v652
  %v703 = vadd.f32 %v603, %v653
  %v704 = vadd.f32 %v604, %v654
  %v705 = vadd.f32 %v605, %v655
  %v706 = vadd.f32 %v606, %v656
  %v707 = vadd.f32 %v607, %v657
  %v708 = vadd.f32 %v608, %v658
  %v709 = vadd.f32 %v609, %v659
  %v710 = vadd.f32 %v610, %v660
  %v711 = vadd.f32 %v611, %v661
  %v712 = vadd.f32 %v612, %v662
  %v713 = vadd.f32 %v613, %v663
  %v714 = vadd.f32 %v614, %v664
  %v715 = vadd.f32 %v615, %v665
  %v716 = vadd.f32 %v616, %v666
  %v717 = vadd.f32 %v617, %v667
  %v718 = vadd.f32 %v618, %v668
  %v719 = vadd.f32 %v619, %v669
  %v720 = vadd.f32 %v620, %v670
  %v721 = vadd.f32 %v621, %v671
  %v722 = vadd.f32 %v622, %v672
  %v723 = vadd.f32 %v623, %v673
  %v724 = vadd.f32 %v624, %v674
  %v725 = vadd.f32 %v625, %v675
  %v726 = vadd.f32 %v626, %v676
  %v727 = vadd.f32 %v627, %v677
  %v728 = vadd.f32 %v628, %v678
  %v729 = vadd.f32 %v629, %v679
  %v730 = vadd.f32 %v630, %v680
  %v731 = vadd.f32 %v631, %v681
  %v732 = vadd.f32 %v632, %v682
  %v733 = vadd.f32 %v633, %v683
  %v734 = vadd.f32 %v634, %v684
  %v735 = vadd.f32 %v635, %v685
  %v736 = vadd.f32 %v636, %v686
  %v737 = vadd.f32 %v637, %v687
  %v738 = vadd.f32 %v638, %v688
  %v739 = vadd.f32 %v639, %v689
  %v740 = vadd.f32 %v640, %v690
  %v741 = vadd.f32 %v641, %v691
  %v742 = vadd.f32 %v642, %v692
  %v743 = vadd.f32 %v643, %v693
  %v744 = vadd.f32 %v644, %v694
  %v745 = vadd.f32 %v645, %v695
  %v746 = vadd.f32 %v646, %v696
  %v747 = vadd.f32 %v647, %v697
  %v748 = vadd.f32 %v648, %v698
  %v749 = vadd.f32 %v649, %v699
  %v750 = vmul.f32 %v550, %v550
  %v751 = vmul.f32 %v551, %v551
  %v752 = vmul.f32 %v552, %v552
  %v753 = vmul.f32 %v553, %v553
  %v754 = vmul.f32 %v554, %v554
  %v755 = vmul.f32 %v555, %v555
  %v756 = vmul.f32 %v556, %v556
  %v757 = vmul.f32 %v557, %v557
  %v758 = vmul.f32 %v558, %v558
  %v759 = vmul.f32 %v559, %v559
  %v760 = vmul.f32 %v560, %v560
  %v761 = vmul.f32 %v561, %v561
  %v762 = vmul.f32 %v562, %v562
  %v763 = vmul.f32 %v563, %v563
  %v764 = vmul.f32 %v564, %v564
  %v765 = vmul.f32 %v565, %v565
  %v766 = vmul.f32 %v566, %v566
  %v767 = vmul.f32 %v567, %v567
  %v768 = vmul.f32 %v568, %v568
  %v769 = vmul.f32 %v569, %v569
  %v770 = vmul.f32 %v570, %v570
  %v771 = vmul.f32 %v571, %v571
  %v772 = vmul.f32 %v572, %v572
  %v773 = vmul.f32 %v573, %v573
  %v774 = vmul.f32 %v574, %v574
  %v775 = vmul.f32 %v575, %v575
  %v776 = vmul.f32 %v576, %v576
  %v777 = vmul.f32 %v577, %v577
  %v778 = vmul.f32 %v578, %v578
  %v779 = vmul.f32 %v579, %v579
  %v780 = vmul.f32 %v580, %v580
  %v781 = vmul.f32 %v581, %v581
  %v782 = vmul.f32 %v582, %v582
  %v783 = vmul.f32 %v583, %v583
  %v784 = vmul.f32 %v584, %v584
  %v785 = vmul.f32 %v585, %v585
  %v786 = vmul.f32 %v586, %v586
  %v787 = vmul.f32 %v587, %v587
  %v788 = vmul.f32 %v588, %v588
  %v789 = vmul.f32 %v589, %v589
  %v790 = vmul.f32 %v590, %v590
  %v791 = vmul.f32 %v591, %v591
  %v792 = vmul.f32 %v592, %v592
  %v793 = vmul.f32 %v593, %v593
  %v794 = vmul.f32 %v594, %v594
  %v795 = vmul.f32 %v595, %v595
  %v796 = vmul.f32 %v596, %v596
  %v797 = vmul.f32 %v597, %v597
  %v798 = vmul.f32 %v598, %v598
  %v799 = vmul.f32 %v599, %v599
  %v800 = vadd.f32 %v700, %v750
  %v801 = vadd.f32 %v701, %v751
  %v802 = vadd.f32 %v702, %v752
  %v803 = vadd.f32 %v703, %v753
  %v804 = vadd.f32 %v704, %v754
  %v805 = vadd.f32 %v705, %v755
  %v806 = vadd.f32 %v706, %v756
  %v807 = vadd.f32 %v707, %v757
  %v808 = vadd.f32 %v708, %v758
  %v809 = vadd.f32 %v709, %v759
  %v810 = vadd.f32 %v710, %v760
  %v811 = vadd.f32 %v711, %v761
  %v812 = vadd.f32 %v712, %v762
  %v813 = vadd.f32 %v713, %v763
  %v814 = vadd.f32 %v714, %v764
  %v815 = vadd.f32 %v715, %v765
  %v816 = vadd.f32 %v716, %v766
  %v817 = vadd.f32 %v717, %v767
  %v818 = vadd.f32 %v718, %v768
  %v819 = vadd.f32 %v719, %v769
  %v820 = vadd.f32 %v720, %v770
  %v821 = vadd.f32 %v721, %v771
  %v822 = vadd.f32 %v722, %v772
  %v823 = vadd.f32 %v723, %v773
  %v824 = vadd.f32 %v724, %v774
  %v825 = vadd.f32 %v725, %v775
  %v826 = vadd.f32 %v726, %v776
  %v827 = vadd.f32 %v727, %v777
  %v828 = vadd.f32 %v728, %v778
  %v829 = vadd.f32 %v729, %v779
  %v830 = vadd.f32 %v730, %v780
  %v831 = vadd.f32 %v731, %v781
  %v832 = vadd.f32 %v732, %v782
  %v833 = vadd.f32 %v733, %v783
  %v834 = vadd.f32 %v734, %v784
  %v835 = vadd.f32 %v735, %v785
  %v836 = vadd.f32 %v736, %v786
  %v837 = vadd.f32 %v737, %v787
  %v838 = vadd.f32 %v738, %v788
  %v839 = vadd.f32 %v739, %v789
  %v840 = vadd.f32 %v740, %v790
  %v841 = vadd.f32 %v741, %v791
  %v842 = vadd.f32 %v742, %v792
  %v843 = vadd.f32 %v743, %v793
  %v844 = vadd.f32 %v744, %v794
  %v845 = vadd.f32 %v745, %v795
  %v846 = vadd.f32 %v746, %v796
  %v847 = vadd.f32 %v747, %v797
  %v848 = vadd.f32 %v748, %v798
  %v849 = vadd.f32 %v749, %v799
  %v850 = vsub.f32 0.0, %v800
  %v851 = vsub.f32 0.0, %v801
  %v852 = vsub.f32 0.0, %v802
  %v853 = vsub.f32 0.0, %v803
  %v854 = vsub.f32 0.0, %v804
  %v855 = vsub.f32 0.0, %v805
  %v856 = vsub.f32 0.0, %v806
  %v857 = vsub.f32 0.0, %v807
  %v858 = vsub.f32 0.0, %v808
  %v859 = vsub.f32 0.0, %v809
  %v860 = vsub.f32 0.0, %v810
  %v861 = vsub.f32 0.0, %v811
  %v862 = vsub.f32 0.0, %v812
  %v863 = vsub.f32 0.0, %v813
  %v864 = vsub.f32 0.0, %v814
  %v865 = vsub.f32 0.0, %v815
  %v866 = vsub.f32 0.0, %v816
  %v867 = vsub.f32 0.0, %v817
  %v868 = vsub.f32 0.0, %v818
  %v869 = vsub.f32 0.0, %v819
  %v870 = vsub.f32 0.0, %v820
  %v871 = vsub.f32 0.0, %v821
  %v872 = vsub.f32 0.0, %v822
  %v873 = vsub.f32 0.0, %v823
  %v874 = vsub.f32 0.0, %v824
  %v875 = vsub.f32 0.0, %v825
  %v876 = vsub.f32 0.0, %v826
  %v877 = vsub.f32 0.0, %v827
  %v878 = vsub.f32 0.0, %v828
  %v879 = vsub.f32 0.0, %v829
  %v880 = vsub.f32 0.0, %v830
  %v881 = vsub.f32 0.0, %v831
  %v882 = vsub.f32 0.0, %v832
  %v883 = vsub.f32 0.0, %v833
  %v884 = vsub.f32 0.0, %v834
  %v885 = vsub.f32 0.0, %v835
  %v886 = vsub.f32 0.0, %v836
  %v887 = vsub.f32 0.0, %v837
  %v888 = vsub.f32 0.0, %v838
  %v889 = vsub.f32 0.0, %v839
  %v890 = vsub.f32 0.0, %v840
  %v891 = vsub.f32 0.0, %v841
  %v892 = vsub.f32 0.0, %v842
  %v893 = vsub.f32 0.0, %v843
  %v894 = vsub.f32 0.0, %v844
  %v895 = vsub.f32 0.0, %v845
  %v896 = vsub.f32 0.0, %v846
  %v897 = vsub.f32 0.0, %v847
  %v898 = vsub.f32 0.0, %v848
  %v899 = vsub.f32 0.0, %v849
  %v900 = vmul.f32 %v850, 2.0
  %v901 = vmul.f32 %v851, 2.0
  %v902 = vmul.f32 %v852, 2.0
  %v903 = vmul.f32 %v853, 2.0
  %v904 = vmul.f32 %v854, 2.0
  %v905 = vmul.f32 %v855, 2.0
  %v906 = vmul.f32 %v856, 2.0
  %v907 = vmul.f32 %v857, 2.0
  %v908 = vmul.f32 %v858, 2.0
  %v909 = vmul.f32 %v859, 2.0
  %v910 = vmul.f32 %v860, 2.0
  %v911 = vmul.f32 %v861, 2.0
  %v912 = vmul.f32 %v862, 2.0
  %v913 = vmul.f32 %v863, 2.0
  %v914 = vmul.f32 %v864, 2.0
  %v915 = vmul.f32 %v865, 2.0
  %v916 = vmul.f32 %v866, 2.0
  %v917 = vmul.f32 %v867, 2.0
  %v918 = vmul.f32 %v868, 2.0
  %v919 = vmul.f32 %v869, 2.0
  %v920 = vmul.f32 %v870, 2.0
  %v921 = vmul.f32 %v871, 2.0
  %v922 = vmul.f32 %v872, 2.0
  %v923 = vmul.f32 %v873, 2.0
  %v924 = vmul.f32 %v874, 2.0
  %v925 = vmul.f32 %v875, 2.0
  %v926 = vmul.f32 %v876, 2.0
  %v927 = vmul.f32 %v877, 2.0
  %v928 = vmul.f32 %v878, 2.0
  %v929 = vmul.f32 %v879, 2.0
  %v930 = vmul.f32 %v880, 2.0
  %v931 = vmul.f32 %v881, 2.0
  %v932 = vmul.f32 %v882, 2.0
  %v933 = vmul.f32 %v883, 2.0
  %v934 = vmul.f32 %v884, 2.0
  %v935 = vmul.f32 %v885, 2.0
  %v936 = vmul.f32 %v886, 2.0
  %v937 = vmul.f32 %v887, 2.0
  %v938 = vmul.f32 %v888, 2.0
  %v939 = vmul.f32 %v889, 2.0
  %v940 = vmul.f32 %v890, 2.0
  %v941 = vmul.f32 %v891, 2.0
  %v942 = vmul.f32 %v892, 2.0
  %v943 = vmul.f32 %v893, 2.0
  %v944 = vmul.f32 %v894, 2.0
  %v945 = vmul.f32 %v895, 2.0
  %v946 = vmul.f32 %v896, 2.0
  %v947 = vmul.f32 %v897, 2.0
  %v948 = vmul.f32 %v898, 2.0
  %v949 = vmul.f32 %v899, 2.0
  %v950 = vmul.f32 %v900, 1.442695
  %v951 = vpow.pop %v950
  %v952 = vmul.f32 %v901, 1.442695
  %v953 = vpow.pop %v952
  %v954 = vmul.f32 %v902, 1.442695
  %v955 = vpow.pop %v954
  %v956 = vmul.f32 %v903, 1.442695
  %v957 = vpow.pop %v956
  %v958 = vmul.f32 %v904, 1.442695
  %v959 = vpow.pop %v958
  %v960 = vmul.f32 %v905, 1.442695
  %v961 = vpow.pop %v960
  %v962 = vmul.f32 %v906, 1.442695
  %v963 = vpow.pop %v962
  %v964 = vmul.f32 %v907, 1.442695
  %v965 = vpow.pop %v964
  %v966 = vmul.f32 %v908, 1.442695
  %v967 = vpow.pop %v966
  %v968 = vmul.f32 %v909, 1.442695
  %v969 = vpow.pop %v968
  %v970 = vmul.f32 %v910, 1.442695
  %v971 = vpow.pop %v970
  %v972 = vmul.f32 %v911, 1.442695
  %v973 = vpow.pop %v972
  %v974 = vmul.f32 %v912, 1.442695
  %v975 = vpow.pop %v974
  %v976 = vmul.f32 %v913, 1.442695
  %v977 = vpow.pop %v976
  %v978 = vmul.f32 %v914, 1.442695
  %v979 = vpow.pop %v978
  %v980 = vmul.f32 %v915, 1.442695
  %v981 = vpow.pop %v980
  %v982 = vmul.f32 %v916, 1.442695
  %v983 = vpow.pop %v982
  %v984 = vmul.f32 %v917, 1.442695
  %v985 = vpow.pop %v984
  %v986 = vmul.f32 %v918, 1.442695
  %v987 = vpow.pop %v986
  %v988 = vmul.f32 %v919, 1.442695
  %v989 = vpow.pop %v988
  %v990 = vmul.f32 %v920, 1.442695
  %v991 = vpow.pop %v990
  %v992 = vmul.f32 %v921, 1.442695
  %v993 = vpow.pop %v992
  %v994 = vmul.f32 %v922, 1.442695
  %v995 = vpow.pop %v994
  %v996 = vmul.f32 %v923, 1.442695
  %v997 = vpow.pop %v996
  %v998 = vmul.f32 %v924, 1.442695
  %v999 = vpow.pop %v998
  %v1000 = vmul.f32 %v925, 1.442695
  %v1001 = vpow.pop %v1000
  %v1002 = vmul.f32 %v926, 1.442695
  %v1003 = vpow.pop %v1002
  %v1004 = vmul.f32 %v927, 1.442695
  %v1005 = vpow.pop %v1004
  %v1006 = vmul.f32 %v928, 1.442695
  %v1007 = vpow.pop %v1006
  %v1008 = vmul.f32 %v929, 1.442695
  %v1009 = vpow.pop %v1008
  %v1010 = vmul.f32 %v930, 1.442695
  %v1011 = vpow.pop %v1010
  %v1012 = vmul.f32 %v931, 1.442695
  %v1013 = vpow.pop %v1012
  %v1014 = vmul.f32 %v932, 1.442695
  %v1015 = vpow.pop %v1014
  %v1016 = vmul.f32 %v933, 1.442695
  %v1017 = vpow.pop %v1016
  %v1018 = vmul.f32 %v934, 1.442695
  %v1019 = vpow.pop %v1018
  %v1020 = vmul.f32 %v935, 1.442695
  %v1021 = vpow.pop %v1020
  %v1022 = vmul.f32 %v936, 1.442695
  %v1023 = vpow.pop %v1022
  %v1024 = vmul.f32 %v937, 1.442695
  %v1025 = vpow.pop %v1024
  %v1026 = vmul.f32 %v938, 1.442695
  %v1027 = vpow.pop %v1026
  %v1028 = vmul.f32 %v939, 1.442695
  %v1029 = vpow.pop %v1028
  %v1030 = vmul.f32 %v940, 1.442695
  %v1031 = vpow.pop %v1030
  %v1032 = vmul.f32 %v941, 1.442695
  %v1033 = vpow.pop %v1032
  %v1034 = vmul.f32 %v942, 1.442695
  %v1035 = vpow.pop %v1034
  %v1036 = vmul.f32 %v943, 1.442695
  %v1037 = vpow.pop %v1036
  %v1038 = vmul.f32 %v944, 1.442695
  %v1039 = vpow.pop %v1038
  %v1040 = vmul.f32 %v945, 1.442695
  %v1041 = vpow.pop %v1040
  %v1042 = vmul.f32 %v946, 1.442695
  %v1043 = vpow.pop %v1042
  %v1044 = vmul.f32 %v947, 1.442695
  %v1045 = vpow.pop %v1044
  %v1046 = vmul.f32 %v948, 1.442695
  %v1047 = vpow.pop %v1046
  %v1048 = vmul.f32 %v949, 1.442695
  %v1049 = vpow.pop %v1048
  %v1050 = vld [vmem:[#allocation2] sm:$0xff]
  %v1051 = vld [vmem:[#allocation2 + $0x8] sm:$0xff]
  %v1052 = vld [vmem:[#allocation2 + $0x10] sm:$0xff]
  %v1053 = vld [vmem:[#allocation2 + $0x18] sm:$0xff]
  %v1054 = vld [vmem:[#allocation2 + $0x20] sm:$0xff]
  %v1055 = vld [vmem:[#allocation2 + $0x28] sm:$0xff]
  %v1056 = vld [vmem:[#allocation2 + $0x30] sm:$0xff]
  %v1057 = vld [vmem:[#allocation2 + $0x38] sm:$0xff]
  %v1058 = vld [vmem:[#allocation2 + $0x40] sm:$0xff]
  %v1059 = vld [vmem:[#allocation2 + $0x48] sm:$0xff]
  %v1060 = vld [vmem:[#allocation2 + $0x50] sm:$0xff]
  %v1061 = vld [vmem:[#allocation2 + $0x58] sm:$0xff]
  %v1062 = vld [vmem:[#allocation2 + $0x60] sm:$0xff]
  %v1063 = vld [vmem:[#allocation2 + $0x68] sm:$0xff]
  %v1064 = vld [vmem:[#allocation2 + $0x70] sm:$0xff]
  %v1065 = vld [vmem:[#allocation2 + $0x78] sm:$0xff]
  %v1066 = vld [vmem:[#allocation2 + $0x80] sm:$0xff]
  %v1067 = vld [vmem:[#allocation2 + $0x88] sm:$0xff]
  %v1068 = vld [vmem:[#allocation2 + $0x90] sm:$0xff]
  %v1069 = vld [vmem:[#allocation2 + $0x98] sm:$0xff]
  %v1070 = vld [vmem:[#allocation2 + $0xa0] sm:$0xff]
  %v1071 = vld [vmem:[#allocation2 + $0xa8] sm:$0xff]
  %v1072 = vld [vmem:[#allocation2 + $0xb0] sm:$0xff]
  %v1073 = vld [vmem:[#allocation2 + $0xb8] sm:$0xff]
  %v1074 = vld [vmem:[#allocation2 + $0xc0] sm:$0xff]
  %v1075 = vld [vmem:[%s2] sm:$0xff]
  %v1076 = vld [vmem:[%s2 + $0x8] sm:$0xff]
  %v1077 = vld [vmem:[%s2 + $0x10] sm:$0xff]
  %v1078 = vld [vmem:[%s2 + $0x18] sm:$0xff]
  %v1079 = vld [vmem:[%s2 + $0x20] sm:$0xff]
  %v1080 = vld [vmem:[%s2 + $0x28] sm:$0xff]
  %v1081 = vld [vmem:[%s2 + $0x30] sm:$0xff]
  %v1082 = vld [vmem:[%s2 + $0x38] sm:$0xff]
  %v1083 = vld [vmem:[%s2 + $0x40] sm:$0xff]
  %v1084 = vld [vmem:[%s2 + $0x48] sm:$0xff]
  %v1085 = vld [vmem:[%s2 + $0x50] sm:$0xff]
  %v1086 = vld [vmem:[%s2 + $0x58] sm:$0xff]
  %v1087 = vld [vmem:[%s2 + $0x60] sm:$0xff]
  %v1088 = vld [vmem:[%s2 + $0x68] sm:$0xff]
  %v1089 = vld [vmem:[%s2 + $0x70] sm:$0xff]
  %v1090 = vld [vmem:[%s2 + $0x78] sm:$0xff]
  %v1091 = vld [vmem:[%s2 + $0x80] sm:$0xff]
  %v1092 = vld [vmem:[%s2 + $0x88] sm:$0xff]
  %v1093 = vld [vmem:[%s2 + $0x90] sm:$0xff]
  %v1094 = vld [vmem:[%s2 + $0x98] sm:$0xff]
  %v1095 = vld [vmem:[%s2 + $0xa0] sm:$0xff]
  %v1096 = vld [vmem:[%s2 + $0xa8] sm:$0xff]
  %v1097 = vld [vmem:[%s2 + $0xb0] sm:$0xff]
  %v1098 = vld [vmem:[%s2 + $0xb8] sm:$0xff]
  %v1099 = vld [vmem:[%s2 + $0xc0] sm:$0xff]
  %v1100 = vld [vmem:[%s2 + $0xc8] sm:$0xff]
  %v1101 = vld [vmem:[%s2 + $0xd0] sm:$0xff]
  %v1102 = vld [vmem:[%s2 + $0xd8] sm:$0xff]
  %v1103 = vld [vmem:[%s2 + $0xe0] sm:$0xff]
  %v1104 = vld [vmem:[%s2 + $0xe8] sm:$0xff]
  %v1105 = vld [vmem:[%s2 + $0xf0] sm:$0xff]
  %v1106 = vld [vmem:[%s2 + $0xf8] sm:$0xff]
  %1107 = vmatprep.subr.mxu0 0.0
  %1108 = vmatpush1.msra.mxu0 %v1075
  %1109 = vmatprep.subr.mxu0 0.0
  %1110 = vmatpush1.msra.mxu0 %v1076
  %1111 = vmatprep.subr.mxu0 0.0
  %1112 = vmatpush1.msra.mxu0 %v1077
  %1113 = vmatprep.subr.mxu0 0.0
  %1114 = vmatpush1.msra.mxu0 %v1078
  %1115 = vmatprep.subr.mxu0 0.0
  %1116 = vmatpush1.msra.mxu0 %v1079
  %1117 = vmatprep.subr.mxu0 0.0
  %1118 = vmatpush1.msra.mxu0 %v1080
  %1119 = vmatprep.subr.mxu0 0.0
  %1120 = vmatpush1.msra.mxu0 %v1081
  %1121 = vmatprep.subr.mxu0 0.0
  %1122 = vmatpush1.msra.mxu0 %v1082
  %1123 = vmatprep.subr.mxu0 0.0
  %1124 = vmatpush1.msra.mxu0 %v1083
  %1125 = vmatprep.subr.mxu0 0.0
  %1126 = vmatpush1.msra.mxu0 %v1084
  %1127 = vmatprep.subr.mxu0 0.0
  %1128 = vmatpush1.msra.mxu0 %v1085
  %1129 = vmatprep.subr.mxu0 0.0
  %1130 = vmatpush1.msra.mxu0 %v1086
  %1131 = vmatprep.subr.mxu0 0.0
  %1132 = vmatpush1.msra.mxu0 %v1087
  %1133 = vmatprep.subr.mxu0 0.0
  %1134 = vmatpush1.msra.mxu0 %v1088
  %1135 = vmatprep.subr.mxu0 0.0
  %1136 = vmatpush1.msra.mxu0 %v1089
  %1137 = vmatprep.subr.mxu0 0.0
  %1138 = vmatpush1.msra.mxu0 %v1090
  %1139 = vmatprep.subr.mxu0 0.0
  %1140 = vmatpush1.msra.mxu0 %v1091
  %1141 = vmatprep.subr.mxu0 0.0
  %1142 = vmatpush1.msra.mxu0 %v1092
  %1143 = vmatprep.subr.mxu0 0.0
  %1144 = vmatpush1.msra.mxu0 %v1093
  %1145 = vmatprep.subr.mxu0 0.0
  %1146 = vmatpush1.msra.mxu0 %v1094
  %1147 = vmatprep.subr.mxu0 0.0
  %1148 = vmatpush1.msra.mxu0 %v1095
  %1149 = vmatprep.subr.mxu0 0.0
  %1150 = vmatpush1.msra.mxu0 %v1096
  %1151 = vmatprep.subr.mxu0 0.0
  %1152 = vmatpush1.msra.mxu0 %v1097
  %1153 = vmatprep.subr.mxu0 0.0
  %1154 = vmatpush1.msra.mxu0 %v1098
  %1155 = vmatprep.subr.mxu0 0.0
  %1156 = vmatpush1.msra.mxu0 %v1099
  %1157 = vmatprep.subr.mxu0 0.0
  %1158 = vmatpush1.msra.mxu0 %v1100
  %1159 = vmatprep.subr.mxu0 0.0
  %1160 = vmatpush1.msra.mxu0 %v1101
  %1161 = vmatprep.subr.mxu0 0.0
  %1162 = vmatpush1.msra.mxu0 %v1102
  %1163 = vmatprep.subr.mxu0 0.0
  %1164 = vmatpush1.msra.mxu0 %v1103
  %1165 = vmatprep.subr.mxu0 0.0
  %1166 = vmatpush1.msra.mxu0 %v1104
  %1167 = vmatprep.subr.mxu0 0.0
  %1168 = vmatpush1.msra.mxu0 %v1105
  %1169 = vmatprep.subr.mxu0 0.0
  %1170 = vmatpush1.msra.mxu0 %v1106
  %1171 = vmatprep.mubr.f32.mxu0 %v953
  %1172 = vmatmul.mubr.f32.gmra.mrb[0].mxu0 %v951
  %v1173 = vpop.f32.mrb[0].mxu0
  %v1174 = vadd.f32 0.0, %v1173
  %v1175 = vpop.f32.mrb[0].mxu0
  %1176 = vmatprep.mubr.f32.mxu0 %v957
  %1177 = vmatmul.mubr.f32.gmra.mrb[0].mxu0 %v955
  %v1178 = vpop.f32.mrb[0].mxu0
  %v1179 = vadd.f32 0.0, %v1178
  %v1180 = vpop.f32.mrb[0].mxu0
  %1181 = vmatprep.mubr.f32.mxu0 %v961
  %1182 = vmatmul.mubr.f32.gmra.mrb[0].mxu0 %v959
  %v1183 = vpop.f32.mrb[0].mxu0
  %v1184 = vadd.f32 0.0, %v1183
  %v1185 = vpop.f32.mrb[0].mxu0
  %1186 = vmatprep.mubr.f32.mxu0 %v965
  %1187 = vmatmul.mubr.f32.gmra.mrb[0].mxu0 %v963
  %v1188 = vpop.f32.mrb[0].mxu0
  %v1189 = vadd.f32 0.0, %v1188
  %v1190 = vpop.f32.mrb[0].mxu0
  %1191 = vmatprep.mubr.f32.mxu0 %v969
  %1192 = vmatmul.mubr.f32.gmra.mrb[0].mxu0 %v967
  %v1193 = vpop.f32.mrb[0].mxu0
  %v1194 = vadd.f32 0.0, %v1193
  %v1195 = vpop.f32.mrb[0].mxu0
  %1196 = vmatprep.mubr.f32.mxu0 %v973
  %1197 = vmatmul.mubr.f32.gmra.mrb[0].mxu0 %v971
  %v1198 = vpop.f32.mrb[0].mxu0
  %v1199 = vadd.f32 0.0, %v1198
  %v1200 = vpop.f32.mrb[0].mxu0
  %1201 = vmatprep.mubr.f32.mxu0 %v977
  %1202 = vmatmul.mubr.f32.gmra.mrb[0].mxu0 %v975
  %v1203 = vpop.f32.mrb[0].mxu0
  %v1204 = vadd.f32 0.0, %v1203
  %v1205 = vpop.f32.mrb[0].mxu0
  %1206 = vmatprep.mubr.f32.mxu0 %v981
  %1207 = vmatmul.mubr.f32.gmra.mrb[0].mxu0 %v979
  %v1208 = vpop.f32.mrb[0].mxu0
  %v1209 = vadd.f32 0.0, %v1208
  %v1210 = vpop.f32.mrb[0].mxu0
  %1211 = vmatprep.mubr.f32.mxu0 %v985
  %1212 = vmatmul.mubr.f32.gmra.mrb[0].mxu0 %v983
  %v1213 = vpop.f32.mrb[0].mxu0
  %v1214 = vadd.f32 0.0, %v1213
  %v1215 = vpop.f32.mrb[0].mxu0
  %1216 = vmatprep.mubr.f32.mxu0 %v989
  %1217 = vmatmul.mubr.f32.gmra.mrb[0].mxu0 %v987
  %v1218 = vpop.f32.mrb[0].mxu0
  %v1219 = vadd.f32 0.0, %v1218
  %v1220 = vpop.f32.mrb[0].mxu0
  %1221 = vmatprep.mubr.f32.mxu0 %v993
  %1222 = vmatmul.mubr.f32.gmra.mrb[0].mxu0 %v991
  %v1223 = vpop.f32.mrb[0].mxu0
  %v1224 = vadd.f32 0.0, %v1223
  %v1225 = vpop.f32.mrb[0].mxu0
  %1226 = vmatprep.mubr.f32.mxu0 %v997
  %1227 = vmatmul.mubr.f32.gmra.mrb[0].mxu0 %v995
  %v1228 = vpop.f32.mrb[0].mxu0
  %v1229 = vadd.f32 0.0, %v1228
  %v1230 = vpop.f32.mrb[0].mxu0
  %1231 = vmatprep.mubr.f32.mxu0 %v1001
  %1232 = vmatmul.mubr.f32.gmra.mrb[0].mxu0 %v999
  %v1233 = vpop.f32.mrb[0].mxu0
  %v1234 = vadd.f32 0.0, %v1233
  %v1235 = vpop.f32.mrb[0].mxu0
  %1236 = vmatprep.mubr.f32.mxu0 %v1005
  %1237 = vmatmul.mubr.f32.gmra.mrb[0].mxu0 %v1003
  %v1238 = vpop.f32.mrb[0].mxu0
  %v1239 = vadd.f32 0.0, %v1238
  %v1240 = vpop.f32.mrb[0].mxu0
  %1241 = vmatprep.mubr.f32.mxu0 %v1009
  %1242 = vmatmul.mubr.f32.gmra.mrb[0].mxu0 %v1007
  %v1243 = vpop.f32.mrb[0].mxu0
  %v1244 = vadd.f32 0.0, %v1243
  %v1245 = vpop.f32.mrb[0].mxu0
  %1246 = vmatprep.mubr.f32.mxu0 %v1013
  %1247 = vmatmul.mubr.f32.gmra.mrb[0].mxu0 %v1011
  %v1248 = vpop.f32.mrb[0].mxu0
  %v1249 = vadd.f32 0.0, %v1248
  %v1250 = vpop.f32.mrb[0].mxu0
  %1251 = vmatprep.mubr.f32.mxu0 %v1017
  %1252 = vmatmul.mubr.f32.gmra.mrb[0].mxu0 %v1015
  %v1253 = vpop.f32.mrb[0].mxu0
  %v1254 = vadd.f32 0.0, %v1253
  %v1255 = vpop.f32.mrb[0].mxu0
  %1256 = vmatprep.mubr.f32.mxu0 %v1021
  %1257 = vmatmul.mubr.f32.gmra.mrb[0].mxu0 %v1019
  %v1258 = vpop.f32.mrb[0].mxu0
  %v1259 = vadd.f32 0.0, %v1258
  %v1260 = vpop.f32.mrb[0].mxu0
  %1261 = vmatprep.mubr.f32.mxu0 %v1025
  %1262 = vmatmul.mubr.f32.gmra.mrb[0].mxu0 %v1023
  %v1263 = vpop.f32.mrb[0].mxu0
  %v1264 = vadd.f32 0.0, %v1263
  %v1265 = vpop.f32.mrb[0].mxu0
  %1266 = vmatprep.mubr.f32.mxu0 %v1029
  %1267 = vmatmul.mubr.f32.gmra.mrb[0].mxu0 %v1027
  %v1268 = vpop.f32.mrb[0].mxu0
  %v1269 = vadd.f32 0.0, %v1268
  %v1270 = vpop.f32.mrb[0].mxu0
  %1271 = vmatprep.mubr.f32.mxu0 %v1033
  %1272 = vmatmul.mubr.f32.gmra.mrb[0].mxu0 %v1031
  %v1273 = vpop.f32.mrb[0].mxu0
  %v1274 = vadd.f32 0.0, %v1273
  %v1275 = vpop.f32.mrb[0].mxu0
  %1276 = vmatprep.mubr.f32.mxu0 %v1037
  %1277 = vmatmul.mubr.f32.gmra.mrb[0].mxu0 %v1035
  %v1278 = vpop.f32.mrb[0].mxu0
  %v1279 = vadd.f32 0.0, %v1278
  %v1280 = vpop.f32.mrb[0].mxu0
  %1281 = vmatprep.mubr.f32.mxu0 %v1041
  %1282 = vmatmul.mubr.f32.gmra.mrb[0].mxu0 %v1039
  %v1283 = vpop.f32.mrb[0].mxu0
  %v1284 = vadd.f32 0.0, %v1283
  %v1285 = vpop.f32.mrb[0].mxu0
  %1286 = vmatprep.mubr.f32.mxu0 %v1045
  %1287 = vmatmul.mubr.f32.gmra.mrb[0].mxu0 %v1043
  %v1288 = vpop.f32.mrb[0].mxu0
  %v1289 = vadd.f32 0.0, %v1288
  %v1290 = vpop.f32.mrb[0].mxu0
  %1291 = vmatprep.mubr.f32.mxu0 %v1049
  %1292 = vmatmul.mubr.f32.gmra.mrb[0].mxu0 %v1047
  %v1293 = vpop.f32.mrb[0].mxu0
  %v1294 = vadd.f32 0.0, %v1293
  %v1295 = vpop.f32.mrb[0].mxu0
  %1296 = vdwg.mxu0
  %v1297 = vadd.f32 %v1050, %v1174
  %v1298 = vadd.f32 %v1051, %v1179
  %v1299 = vadd.f32 %v1052, %v1184
  %v1300 = vadd.f32 %v1053, %v1189
  %v1301 = vadd.f32 %v1054, %v1194
  %v1302 = vadd.f32 %v1055, %v1199
  %v1303 = vadd.f32 %v1056, %v1204
  %v1304 = vadd.f32 %v1057, %v1209
  %v1305 = vadd.f32 %v1058, %v1214
  %v1306 = vadd.f32 %v1059, %v1219
  %v1307 = vadd.f32 %v1060, %v1224
  %v1308 = vadd.f32 %v1061, %v1229
  %v1309 = vadd.f32 %v1062, %v1234
  %v1310 = vadd.f32 %v1063, %v1239
  %v1311 = vadd.f32 %v1064, %v1244
  %v1312 = vadd.f32 %v1065, %v1249
  %v1313 = vadd.f32 %v1066, %v1254
  %v1314 = vadd.f32 %v1067, %v1259
  %v1315 = vadd.f32 %v1068, %v1264
  %v1316 = vadd.f32 %v1069, %v1269
  %v1317 = vadd.f32 %v1070, %v1274
  %v1318 = vadd.f32 %v1071, %v1279
  %v1319 = vadd.f32 %v1072, %v1284
  %v1320 = vadd.f32 %v1073, %v1289
  %v1321 = vadd.f32 %v1074, %v1294
  %vm1322 = vcmask 15360
  %1323 = vst.msk [vmem:[#allocation2] sm:$0xff] %vm1322, %v1297
  %1324 = vst.msk [vmem:[#allocation2 + $0x8] sm:$0xff] %vm1322, %v1298
  %1325 = vst.msk [vmem:[#allocation2 + $0x10] sm:$0xff] %vm1322, %v1299
  %1326 = vst.msk [vmem:[#allocation2 + $0x18] sm:$0xff] %vm1322, %v1300
  %1327 = vst.msk [vmem:[#allocation2 + $0x20] sm:$0xff] %vm1322, %v1301
  %1328 = vst.msk [vmem:[#allocation2 + $0x28] sm:$0xff] %vm1322, %v1302
  %1329 = vst.msk [vmem:[#allocation2 + $0x30] sm:$0xff] %vm1322, %v1303
  %1330 = vst.msk [vmem:[#allocation2 + $0x38] sm:$0xff] %vm1322, %v1304
  %1331 = vst.msk [vmem:[#allocation2 + $0x40] sm:$0xff] %vm1322, %v1305
  %1332 = vst.msk [vmem:[#allocation2 + $0x48] sm:$0xff] %vm1322, %v1306
  %1333 = vst.msk [vmem:[#allocation2 + $0x50] sm:$0xff] %vm1322, %v1307
  %1334 = vst.msk [vmem:[#allocation2 + $0x58] sm:$0xff] %vm1322, %v1308
  %1335 = vst.msk [vmem:[#allocation2 + $0x60] sm:$0xff] %vm1322, %v1309
  %1336 = vst.msk [vmem:[#allocation2 + $0x68] sm:$0xff] %vm1322, %v1310
  %1337 = vst.msk [vmem:[#allocation2 + $0x70] sm:$0xff] %vm1322, %v1311
  %1338 = vst.msk [vmem:[#allocation2 + $0x78] sm:$0xff] %vm1322, %v1312
  %1339 = vst.msk [vmem:[#allocation2 + $0x80] sm:$0xff] %vm1322, %v1313
  %1340 = vst.msk [vmem:[#allocation2 + $0x88] sm:$0xff] %vm1322, %v1314
  %1341 = vst.msk [vmem:[#allocation2 + $0x90] sm:$0xff] %vm1322, %v1315
  %1342 = vst.msk [vmem:[#allocation2 + $0x98] sm:$0xff] %vm1322, %v1316
  %1343 = vst.msk [vmem:[#allocation2 + $0xa0] sm:$0xff] %vm1322, %v1317
  %1344 = vst.msk [vmem:[#allocation2 + $0xa8] sm:$0xff] %vm1322, %v1318
  %1345 = vst.msk [vmem:[#allocation2 + $0xb0] sm:$0xff] %vm1322, %v1319
  %1346 = vst.msk [vmem:[#allocation2 + $0xb8] sm:$0xff] %vm1322, %v1320
  %1347 = vst.msk [vmem:[#allocation2 + $0xc0] sm:$0xff] %vm1322, %v1321
  // Predicated region
  $region18: #{tpu_custom_call.1} parent=0 // pred_check
    %p1348 = pneg %p14
  $region19: #{tpu_custom_call.1} parent=0 // pred_check_branch
    %1350 = sbr.rel (%p1348) target = $region21
  $region20: #{tpu_custom_call.1} parent=0 // pred_region
    %v1351 = vld [vmem:[#allocation2] sm:$0xff]
    %v1352 = vld [vmem:[#allocation2 + $0x8] sm:$0xff]
    %v1353 = vld [vmem:[#allocation2 + $0x10] sm:$0xff]
    %v1354 = vld [vmem:[#allocation2 + $0x18] sm:$0xff]
    %v1355 = vld [vmem:[#allocation2 + $0x20] sm:$0xff]
    %v1356 = vld [vmem:[#allocation2 + $0x28] sm:$0xff]
    %v1357 = vld [vmem:[#allocation2 + $0x30] sm:$0xff]
    %v1358 = vld [vmem:[#allocation2 + $0x38] sm:$0xff]
    %v1359 = vld [vmem:[#allocation2 + $0x40] sm:$0xff]
    %v1360 = vld [vmem:[#allocation2 + $0x48] sm:$0xff]
    %v1361 = vld [vmem:[#allocation2 + $0x50] sm:$0xff]
    %v1362 = vld [vmem:[#allocation2 + $0x58] sm:$0xff]
    %v1363 = vld [vmem:[#allocation2 + $0x60] sm:$0xff]
    %v1364 = vld [vmem:[#allocation2 + $0x68] sm:$0xff]
    %v1365 = vld [vmem:[#allocation2 + $0x70] sm:$0xff]
    %v1366 = vld [vmem:[#allocation2 + $0x78] sm:$0xff]
    %v1367 = vld [vmem:[#allocation2 + $0x80] sm:$0xff]
    %v1368 = vld [vmem:[#allocation2 + $0x88] sm:$0xff]
    %v1369 = vld [vmem:[#allocation2 + $0x90] sm:$0xff]
    %v1370 = vld [vmem:[#allocation2 + $0x98] sm:$0xff]
    %v1371 = vld [vmem:[#allocation2 + $0xa0] sm:$0xff]
    %v1372 = vld [vmem:[#allocation2 + $0xa8] sm:$0xff]
    %v1373 = vld [vmem:[#allocation2 + $0xb0] sm:$0xff]
    %v1374 = vld [vmem:[#allocation2 + $0xb8] sm:$0xff]
    %v1375 = vld [vmem:[#allocation2 + $0xc0] sm:$0xff]
    %1401 = vrot.lane.b32.xlu0 %v1351, 127
    %v1402 = vpop.permute.xlu0 %1401
    %1403 = vrot.lane.b32.xlu0 %v1352, 127
    %v1404 = vpop.permute.xlu0 %1403
    %1405 = vrot.lane.b32.xlu0 %v1353, 127
    %v1406 = vpop.permute.xlu0 %1405
    %1407 = vrot.lane.b32.xlu0 %v1354, 127
    %v1408 = vpop.permute.xlu0 %1407
    %1409 = vrot.lane.b32.xlu0 %v1355, 127
    %v1410 = vpop.permute.xlu0 %1409
    %1411 = vrot.lane.b32.xlu0 %v1356, 127
    %v1412 = vpop.permute.xlu0 %1411
    %1413 = vrot.lane.b32.xlu0 %v1357, 127
    %v1414 = vpop.permute.xlu0 %1413
    %1415 = vrot.lane.b32.xlu0 %v1358, 127
    %v1416 = vpop.permute.xlu0 %1415
    %1417 = vrot.lane.b32.xlu0 %v1359, 127
    %v1418 = vpop.permute.xlu0 %1417
    %1419 = vrot.lane.b32.xlu0 %v1360, 127
    %v1420 = vpop.permute.xlu0 %1419
    %1421 = vrot.lane.b32.xlu0 %v1361, 127
    %v1422 = vpop.permute.xlu0 %1421
    %1423 = vrot.lane.b32.xlu0 %v1362, 127
    %v1424 = vpop.permute.xlu0 %1423
    %1425 = vrot.lane.b32.xlu0 %v1363, 127
    %v1426 = vpop.permute.xlu0 %1425
    %1427 = vrot.lane.b32.xlu0 %v1364, 127
    %v1428 = vpop.permute.xlu0 %1427
    %1429 = vrot.lane.b32.xlu0 %v1365, 127
    %v1430 = vpop.permute.xlu0 %1429
    %1431 = vrot.lane.b32.xlu0 %v1366, 127
    %v1432 = vpop.permute.xlu0 %1431
    %1433 = vrot.lane.b32.xlu0 %v1367, 127
    %v1434 = vpop.permute.xlu0 %1433
    %1435 = vrot.lane.b32.xlu0 %v1368, 127
    %v1436 = vpop.permute.xlu0 %1435
    %1437 = vrot.lane.b32.xlu0 %v1369, 127
    %v1438 = vpop.permute.xlu0 %1437
    %1439 = vrot.lane.b32.xlu0 %v1370, 127
    %v1440 = vpop.permute.xlu0 %1439
    %1441 = vrot.lane.b32.xlu0 %v1371, 127
    %v1442 = vpop.permute.xlu0 %1441
    %1443 = vrot.lane.b32.xlu0 %v1372, 127
    %v1444 = vpop.permute.xlu0 %1443
    %1445 = vrot.lane.b32.xlu0 %v1373, 127
    %v1446 = vpop.permute.xlu0 %1445
    %1447 = vrot.lane.b32.xlu0 %v1374, 127
    %v1448 = vpop.permute.xlu0 %1447
    %1449 = vrot.lane.b32.xlu0 %v1375, 127
    %v1450 = vpop.permute.xlu0 %1449
    %v1476 = vrcp.pop %v1402
    %v1477 = vmul.f32 %v1351, %v1476
    %v1478 = vrcp.pop %v1404
    %v1479 = vmul.f32 %v1352, %v1478
    %v1480 = vrcp.pop %v1406
    %v1481 = vmul.f32 %v1353, %v1480
    %v1482 = vrcp.pop %v1408
    %v1483 = vmul.f32 %v1354, %v1482
    %v1484 = vrcp.pop %v1410
    %v1485 = vmul.f32 %v1355, %v1484
    %v1486 = vrcp.pop %v1412
    %v1487 = vmul.f32 %v1356, %v1486
    %v1488 = vrcp.pop %v1414
    %v1489 = vmul.f32 %v1357, %v1488
    %v1490 = vrcp.pop %v1416
    %v1491 = vmul.f32 %v1358, %v1490
    %v1492 = vrcp.pop %v1418
    %v1493 = vmul.f32 %v1359, %v1492
    %v1494 = vrcp.pop %v1420
    %v1495 = vmul.f32 %v1360, %v1494
    %v1496 = vrcp.pop %v1422
    %v1497 = vmul.f32 %v1361, %v1496
    %v1498 = vrcp.pop %v1424
    %v1499 = vmul.f32 %v1362, %v1498
    %v1500 = vrcp.pop %v1426
    %v1501 = vmul.f32 %v1363, %v1500
    %v1502 = vrcp.pop %v1428
    %v1503 = vmul.f32 %v1364, %v1502
    %v1504 = vrcp.pop %v1430
    %v1505 = vmul.f32 %v1365, %v1504
    %v1506 = vrcp.pop %v1432
    %v1507 = vmul.f32 %v1366, %v1506
    %v1508 = vrcp.pop %v1434
    %v1509 = vmul.f32 %v1367, %v1508
    %v1510 = vrcp.pop %v1436
    %v1511 = vmul.f32 %v1368, %v1510
    %v1512 = vrcp.pop %v1438
    %v1513 = vmul.f32 %v1369, %v1512
    %v1514 = vrcp.pop %v1440
    %v1515 = vmul.f32 %v1370, %v1514
    %v1516 = vrcp.pop %v1442
    %v1517 = vmul.f32 %v1371, %v1516
    %v1518 = vrcp.pop %v1444
    %v1519 = vmul.f32 %v1372, %v1518
    %v1520 = vrcp.pop %v1446
    %v1521 = vmul.f32 %v1373, %v1520
    %v1522 = vrcp.pop %v1448
    %v1523 = vmul.f32 %v1374, %v1522
    %v1524 = vrcp.pop %v1450
    %v1525 = vmul.f32 %v1375, %v1524
    %vm1526 = vcmask 7168
    %1527 = vst.msk [vmem:[%s3] sm:$0xff] %vm1526, %v1477
    %1528 = vst.msk [vmem:[%s3 + $0x8] sm:$0xff] %vm1526, %v1479
    %1529 = vst.msk [vmem:[%s3 + $0x10] sm:$0xff] %vm1526, %v1481
    %1530 = vst.msk [vmem:[%s3 + $0x18] sm:$0xff] %vm1526, %v1483
    %1531 = vst.msk [vmem:[%s3 + $0x20] sm:$0xff] %vm1526, %v1485
    %1532 = vst.msk [vmem:[%s3 + $0x28] sm:$0xff] %vm1526, %v1487
    %1533 = vst.msk [vmem:[%s3 + $0x30] sm:$0xff] %vm1526, %v1489
    %1534 = vst.msk [vmem:[%s3 + $0x38] sm:$0xff] %vm1526, %v1491
    %1535 = vst.msk [vmem:[%s3 + $0x40] sm:$0xff] %vm1526, %v1493
    %1536 = vst.msk [vmem:[%s3 + $0x48] sm:$0xff] %vm1526, %v1495
    %1537 = vst.msk [vmem:[%s3 + $0x50] sm:$0xff] %vm1526, %v1497
    %1538 = vst.msk [vmem:[%s3 + $0x58] sm:$0xff] %vm1526, %v1499
    %1539 = vst.msk [vmem:[%s3 + $0x60] sm:$0xff] %vm1526, %v1501
    %1540 = vst.msk [vmem:[%s3 + $0x68] sm:$0xff] %vm1526, %v1503
    %1541 = vst.msk [vmem:[%s3 + $0x70] sm:$0xff] %vm1526, %v1505
    %1542 = vst.msk [vmem:[%s3 + $0x78] sm:$0xff] %vm1526, %v1507
    %1543 = vst.msk [vmem:[%s3 + $0x80] sm:$0xff] %vm1526, %v1509
    %1544 = vst.msk [vmem:[%s3 + $0x88] sm:$0xff] %vm1526, %v1511
    %1545 = vst.msk [vmem:[%s3 + $0x90] sm:$0xff] %vm1526, %v1513
    %1546 = vst.msk [vmem:[%s3 + $0x98] sm:$0xff] %vm1526, %v1515
    %1547 = vst.msk [vmem:[%s3 + $0xa0] sm:$0xff] %vm1526, %v1517
    %1548 = vst.msk [vmem:[%s3 + $0xa8] sm:$0xff] %vm1526, %v1519
    %1549 = vst.msk [vmem:[%s3 + $0xb0] sm:$0xff] %vm1526, %v1521
    %1550 = vst.msk [vmem:[%s3 + $0xb8] sm:$0xff] %vm1526, %v1523
    %1551 = vst.msk [vmem:[%s3 + $0xc0] sm:$0xff] %vm1526, %v1525
  $region21: #{tpu_custom_call.1} parent=0 // pred_fallthru
    _
  // Predicated region
  $region22: #{tpu_custom_call.1} parent=0 // pred_check
    _
  $region23: #{tpu_custom_call.1} parent=0 // pred_check_branch
    %1553 = sbr.rel (0) target = $region25
  $region24: #{tpu_custom_call.1} parent=0 // pred_region
    _
  $region25: #{tpu_custom_call.1} parent=0 // pred_fallthru
    _
  // Predicated region
  $region26: #{tpu_custom_call.1} parent=0 // pred_check
    _
  $region27: #{tpu_custom_call.1} parent=0 // pred_check_branch
    %1555 = sbr.rel (0) target = $region29
  $region28: #{tpu_custom_call.1} parent=0 // pred_region
    _
  $region29: #{tpu_custom_call.1} parent=0 // pred_fallthru
    _

</llo_original>
